<compile_context>
chip_gen: v6e
topology: v6e:2x2x1
jax: 0.10.0
libtpu: 0.0.40
codegen_flags: <defaults>
</compile_context>

<pallas_src>
import functools

import jax
import jax.numpy as jnp
from jax.experimental import pallas as pl
from jax.experimental.pallas import tpu as pltpu


# ----------------------------------------------------------------------------
# Kernel 1: fused bidirectional LSTM recurrence (PyTorch gate order i, f, g, o).
#   xf_ref / xb_ref : (1, B, 4H) precomputed gate pre-activations (bias folded)
#                     for the forward step t and the backward step T-1-t.
#   whh*_ref        : (H, 4H) recurrent weights.
#   lens_ref        : (B, H) int32 lengths (lane-broadcast), resident in VMEM.
# ----------------------------------------------------------------------------
def _bilstm_kernel(xf_ref, xb_ref, whhf_ref, whhb_ref, lens_ref,
                   yf_ref, yb_ref, hf_ref, cf_ref, hb_ref, cb_ref,
                   hf_sc, cf_sc, hb_sc, cb_sc, *, hidden_size, seq_len):
    t = pl.program_id(0)
    T = seq_len
    H = hidden_size

    @pl.when(t == 0)
    def _():
        hf_sc[...] = jnp.zeros_like(hf_sc)
        cf_sc[...] = jnp.zeros_like(cf_sc)
        hb_sc[...] = jnp.zeros_like(hb_sc)
        cb_sc[...] = jnp.zeros_like(cb_sc)

    lens = lens_ref[...]                 # (B, H), constant index_map -> DMA'd once
    m_f = t < lens                       # forward valid while t < length
    m_b = (T - 1 - t) < lens             # backward step processes time T-1-t

    def cell(gates, c_prev):
        # NOTE: for real model sizes (H multiple of 128) these slices are
        # lane-group aligned and free; at toy H they are small XLU selects.
        i_g = jax.nn.sigmoid(gates[:, 0 * H:1 * H])
        f_g = jax.nn.sigmoid(gates[:, 1 * H:2 * H])
        g_g = jnp.tanh(gates[:, 2 * H:3 * H])
        o_g = jax.nn.sigmoid(gates[:, 3 * H:4 * H])
        c_new = f_g * c_prev + i_g * g_g
        h_new = o_g * jnp.tanh(c_new)
        return h_new, c_new

    # Recurrent-only matmuls (input projection + bias already folded into x*_ref).
    gates_f = xf_ref[0] + jnp.dot(hf_sc[...], whhf_ref[...],
                                  preferred_element_type=jnp.float32)
    gates_b = xb_ref[0] + jnp.dot(hb_sc[...], whhb_ref[...],
                                  preferred_element_type=jnp.float32)
    hf_new, cf_new = cell(gates_f, cf_sc[...])
    hb_new, cb_new = cell(gates_b, cb_sc[...])

    # packed-sequence semantics: freeze state & zero output past each length
    hf_sc[...] = jnp.where(m_f, hf_new, hf_sc[...])
    cf_sc[...] = jnp.where(m_f, cf_new, cf_sc[...])
    hb_sc[...] = jnp.where(m_b, hb_new, hb_sc[...])
    cb_sc[...] = jnp.where(m_b, cb_new, cb_sc[...])

    yf_ref[0] = jnp.where(m_f, hf_new, 0.0)
    yb_ref[0] = jnp.where(m_b, hb_new, 0.0)   # written at time T-1-t (un-reversed)

    @pl.when(t == T - 1)
    def _():
        hf_ref[...] = hf_sc[...]
        cf_ref[...] = cf_sc[...]
        hb_ref[...] = hb_sc[...]
        cb_ref[...] = cb_sc[...]


def bilstm(xproj, whh_f, whh_b, lens_bh, hidden_size):
    """xproj: (T, B, 8H) = [fwd | bwd] gate pre-activations (biases folded).
       whh_*: (H, 4H), lens_bh: (B, H) int32."""
    T, B, eightH = xproj.shape
    H = hidden_size
    assert eightH == 8 * H

    if (4 * H) % 128 == 0:
        # Slice the fwd/bwd halves straight out of xproj via the BlockSpec
        # (the same array is passed twice -> no HBM split copies).
        xf_in, xb_in = xproj, xproj
        xf_spec = pl.BlockSpec((1, B, 4 * H), lambda t: (t, 0, 0))
        xb_spec = pl.BlockSpec((1, B, 4 * H), lambda t: (T - 1 - t, 0, 1))
    else:
        # Fallback for H not a multiple of 32: split in JAX so blocks span the
        # full last dim and stay (8,128)-legal.
        xf_in = xproj[..., :4 * H]
        xb_in = xproj[..., 4 * H:]
        xf_spec = pl.BlockSpec((1, B, 4 * H), lambda t: (t, 0, 0))
        xb_spec = pl.BlockSpec((1, B, 4 * H), lambda t: (T - 1 - t, 0, 0))

    kernel = functools.partial(_bilstm_kernel, hidden_size=H, seq_len=T)
    return pl.pallas_call(
        kernel,
        out_shape=(jax.ShapeDtypeStruct((T, B, H), jnp.float32),   # y_f
                   jax.ShapeDtypeStruct((T, B, H), jnp.float32),   # y_b (un-reversed)
                   jax.ShapeDtypeStruct((B, H), jnp.float32),      # h_f final
                   jax.ShapeDtypeStruct((B, H), jnp.float32),      # c_f final
                   jax.ShapeDtypeStruct((B, H), jnp.float32),      # h_b final
                   jax.ShapeDtypeStruct((B, H), jnp.float32)),     # c_b final
        grid_spec=pltpu.PrefetchScalarGridSpec(
            num_scalar_prefetch=0,
            grid=(T,),
            in_specs=[
                xf_spec,
                xb_spec,
                pl.BlockSpec((H, 4 * H), lambda t: (0, 0)),
                pl.BlockSpec((H, 4 * H), lambda t: (0, 0)),
                pl.BlockSpec((B, H), lambda t: (0, 0)),
            ],
            out_specs=[
                pl.BlockSpec((1, B, H), lambda t: (t, 0, 0)),
                pl.BlockSpec((1, B, H), lambda t: (T - 1 - t, 0, 0)),
                pl.BlockSpec((B, H), lambda t: (0, 0)),
                pl.BlockSpec((B, H), lambda t: (0, 0)),
                pl.BlockSpec((B, H), lambda t: (0, 0)),
                pl.BlockSpec((B, H), lambda t: (0, 0)),
            ],
            scratch_shapes=[pltpu.VMEM((B, H), jnp.float32),
                            pltpu.VMEM((B, H), jnp.float32),
                            pltpu.VMEM((B, H), jnp.float32),
                            pltpu.VMEM((B, H), jnp.float32)],
        ),
        compiler_params=pltpu.CompilerParams(
            dimension_semantics=("arbitrary",)),
    )(xf_in, xb_in, whh_f, whh_b, lens_bh)


# ----------------------------------------------------------------------------
# Kernel 2: fused GCN (gc1 -> relu -> gc2) + LayerNorm1 residual + FFN residual.
# Processes a block of Bt batch elements per grid step; x@W / FFN matmuls are
# flattened to (Bt*S, H)@(H, H); adjacency products stay batched einsums.
# ----------------------------------------------------------------------------
def _gcn_norm_ffn_kernel(x_ref, adj_ref,
                         gc1w_ref, gc1b_ref, gc2w_ref, gc2b_ref,
                         a2_ref, b2_ref,
                         w1w_ref, w1b_ref, w2w_ref, w2b_ref,
                         out_ref, *, eps):
    x = x_ref[...]          # (Bt, S, H)  summed bidirectional RNN outputs
    adj = adj_ref[...]      # (Bt, S, S)
    Bt, S, H = x.shape

    # GraphConvolution 1: relu(adj @ (x @ W1) + b1)   (dropout = eval identity)
    s1 = jnp.dot(x.reshape(Bt * S, H), gc1w_ref[...],
                 preferred_element_type=jnp.float32).reshape(Bt, S, H)
    h1 = jax.nn.relu(
        jnp.einsum('bij,bjh->bih', adj, s1, preferred_element_type=jnp.float32)
        + gc1b_ref[...])
    # GraphConvolution 2: adj @ (h1 @ W2) + b2
    s2 = jnp.dot(h1.reshape(Bt * S, H), gc2w_ref[...],
                 preferred_element_type=jnp.float32).reshape(Bt, S, H)
    o1 = (jnp.einsum('bij,bjh->bih', adj, s2, preferred_element_type=jnp.float32)
          + gc2b_ref[...])

    # LayerNorm1 (uses SUM of squared deviations, exactly as in the module)
    mean = jnp.mean(o1, axis=-1, keepdims=True)
    d = o1 - mean
    std = jnp.sqrt(jnp.sum(d * d, axis=-1, keepdims=True))
    o2 = a2_ref[...] * d / (std + eps) + b2_ref[...] + x   # residual with RNN out

    # PositionwiseFeedForward: w2(relu(w1(x))) + residual  (dropout = identity)
    f1 = jax.nn.relu(jnp.dot(o2.reshape(Bt * S, H), w1w_ref[...],
                             preferred_element_type=jnp.float32) + w1b_ref[...])
    f2 = jnp.dot(f1, w2w_ref[...], preferred_element_type=jnp.float32) + w2b_ref[...]
    out_ref[...] = f2.reshape(Bt, S, H) + o2


def _pick_block_batch(B, cap=8):
    bt = min(B, cap)
    while B % bt != 0:
        bt -= 1
    return bt


def gcn_norm_ffn(x_bm, adj, p, eps=1e-6):
    """x_bm: (B, S, H) summed bidirectional outputs, adj: (B, S, S)."""
    B, S, H = x_bm.shape
    Bt = _pick_block_batch(B)
    kernel = functools.partial(_gcn_norm_ffn_kernel, eps=eps)
    full2d = lambda name: pl.BlockSpec(p[name].shape, lambda b: (0, 0))
    return pl.pallas_call(
        kernel,
        out_shape=jax.ShapeDtypeStruct((B, S, H), jnp.float32),
        grid_spec=pltpu.PrefetchScalarGridSpec(
            num_scalar_prefetch=0,
            grid=(B // Bt,),
            in_specs=[
                pl.BlockSpec((Bt, S, H), lambda b: (b, 0, 0)),
                pl.BlockSpec((Bt, S, S), lambda b: (b, 0, 0)),
                full2d("gc1_w"), full2d("gc1_b"),
                full2d("gc2_w"), full2d("gc2_b"),
                full2d("norm_a"), full2d("norm_b"),
                full2d("ffn_w1"), full2d("ffn_b1"),
                full2d("ffn_w2"), full2d("ffn_b2"),
            ],
            out_specs=pl.BlockSpec((Bt, S, H), lambda b: (b, 0, 0)),
        ),
        compiler_params=pltpu.CompilerParams(
            dimension_semantics=("parallel",)),
    )(x_bm, adj,
      p["gc1_w"], p["gc1_b"], p["gc2_w"], p["gc2_b"],
      p["norm_a"], p["norm_b"],
      p["ffn_w1"], p["ffn_b1"], p["ffn_w2"], p["ffn_b2"])


# ----------------------------------------------------------------------------
# KnowEncoder / KnowEncoder1 stand-ins (source not provided with the module).
# TODO(synk): original KnowEncoder/KnowEncoder1 definitions are unavailable;
#             these are deterministic stand-ins producing the same output shapes.
# ----------------------------------------------------------------------------
def know_encoder_ww(all_word, p, temp):
    # all_word: (B, S, E) -> word_word (B,S,S,2) hard one-hot, ww_prob (B,S,S,2)
    B, S, E = all_word.shape
    a = jnp.broadcast_to(all_word[:, :, None, :], (B, S, S, E))
    b = jnp.broadcast_to(all_word[:, None, :, :], (B, S, S, E))
    feat = jnp.concatenate([a, b], axis=-1)                       # (B,S,S,2E)
    h = jax.nn.relu(feat @ p["ww_w1"] + p["ww_b1"])
    logits = h @ p["ww_w2"] + p["ww_b2"]                          # (B,S,S,2)
    prob = jax.nn.softmax(logits / temp, axis=-1)
    hard = jax.nn.one_hot(jnp.argmax(prob, axis=-1), 2, dtype=prob.dtype)
    return hard, prob


def know_encoder_wo(all_word, ops_embed, p, temp):
    # all_word: (B,S,E), ops_embed: (B,Nop,H) -> (B,S,Nop,2)
    B, S, E = all_word.shape
    Nop = ops_embed.shape[1]
    a = jnp.broadcast_to(all_word[:, :, None, :], (B, S, Nop, E))
    o = jnp.broadcast_to(ops_embed[:, None, :, :], (B, S, Nop, ops_embed.shape[-1]))
    feat = jnp.concatenate([a, o], axis=-1)                       # (B,S,Nop,E+H)
    h = jax.nn.relu(feat @ p["wo_w1"] + p["wo_b1"])
    logits = h @ p["wo_w2"] + p["wo_b2"]
    prob = jax.nn.softmax(logits / temp, axis=-1)
    hard = jax.nn.one_hot(jnp.argmax(prob, axis=-1), 2, dtype=prob.dtype)
    return hard, prob


# ----------------------------------------------------------------------------
# Parameter init (deterministic, mirrors the PyTorch init distributions).
# ----------------------------------------------------------------------------
def init_params(key, E, H, Nop):
    ks = jax.random.split(key, 24)
    u = lambda k, shape, s: jax.random.uniform(k, shape, jnp.float32, -s, s)
    sH = 1.0 / jnp.sqrt(H)
    p = {}
    # LSTM (bidirectional, 1 layer). PyTorch stores W_ih (4H,E); we keep (E,4H).
    p["lstm_wih_f"] = u(ks[0], (E, 4 * H), sH)
    p["lstm_whh_f"] = u(ks[1], (H, 4 * H), sH)
    p["lstm_b_f"] = u(ks[2], (1, 4 * H), sH) + u(ks[3], (1, 4 * H), sH)  # b_ih + b_hh
    p["lstm_wih_b"] = u(ks[4], (E, 4 * H), sH)
    p["lstm_whh_b"] = u(ks[5], (H, 4 * H), sH)
    p["lstm_b_b"] = u(ks[6], (1, 4 * H), sH) + u(ks[7], (1, 4 * H), sH)
    # GCN (GraphConvolution weights are (in, out) already)
    p["gc1_w"] = u(ks[8], (H, H), sH)
    p["gc1_b"] = u(ks[9], (1, H), sH)
    p["gc2_w"] = u(ks[10], (H, H), sH)
    p["gc2_b"] = u(ks[11], (1, H), sH)
    # LayerNorm1
    p["norm_a"] = jnp.ones((1, H), jnp.float32)
    p["norm_b"] = jnp.zeros((1, H), jnp.float32)
    # PositionwiseFeedForward (nn.Linear stored (out,in); we keep transposed (in,out))
    p["ffn_w1"] = u(ks[12], (H, H), sH)
    p["ffn_b1"] = u(ks[13], (1, H), sH)
    p["ffn_w2"] = u(ks[14], (H, H), sH)
    p["ffn_b2"] = u(ks[15], (1, H), sH)
    # KnowEncoder stand-ins
    p["ww_w1"] = u(ks[16], (2 * E, H), sH)
    p["ww_b1"] = u(ks[17], (H,), sH)
    p["ww_w2"] = u(ks[18], (H, 2), sH)
    p["ww_b2"] = u(ks[19], (2,), sH)
    p["wo_w1"] = u(ks[20], (E + H, H), sH)
    p["wo_b1"] = u(ks[21], (H,), sH)
    p["wo_w2"] = u(ks[22], (H, 2), sH)
    p["wo_b2"] = u(ks[23], (2,), sH)
    return p


# ----------------------------------------------------------------------------
# Encoder.forward
# ----------------------------------------------------------------------------
def encoder_forward(params, sorted_seqs, sorted_len, orig_idx, ops_embed,
                    sort_word_exist_mat, hidden_size, temp=0.5):
    T, B, E = sorted_seqs.shape
    H = hidden_size

    all_word = jnp.transpose(sorted_seqs, (1, 0, 2))                  # (B, S, E)
    word_word, ww_prob = know_encoder_ww(all_word, params, temp)
    word_op, wo_prob = know_encoder_wo(all_word, ops_embed, params, temp)

    # Hoisted LSTM input projection: one wide (T*B, E)@(E, 8H) matmul covering
    # both directions, with both biases folded in (off the serial critical path).
    w_ih_cat = jnp.concatenate([params["lstm_wih_f"], params["lstm_wih_b"]], axis=1)
    b_cat = jnp.concatenate([params["lstm_b_f"], params["lstm_b_b"]], axis=1)
    xproj = (sorted_seqs.reshape(T * B, E) @ w_ih_cat + b_cat).reshape(T, B, 8 * H)

    # per-batch lengths, lane-broadcast so the in-kernel mask is a plain compare
    lens_bh = jnp.broadcast_to(sorted_len.astype(jnp.int32)[:, None], (B, H))

    y_f, y_b, h_f, c_f, h_b, c_b = bilstm(
        xproj, params["lstm_whh_f"], params["lstm_whh_b"], lens_bh, H)

    # bidirectional sum + batch-major layout for the GCN stack (one fused XLA op)
    x_bm = jnp.transpose(y_f + y_b, (1, 0, 2))                        # (B, S, H)

    ww_adj = jnp.where(sort_word_exist_mat == 1, word_word[..., 0],
                       jnp.zeros_like(word_word[..., 0]))             # (B, S, S)

    out_bm = gcn_norm_ffn(x_bm, ww_adj, params)                       # (B, S, H)

    # restore original batch order and (S, B, H) layout
    outputs = jnp.transpose(jnp.take(out_bm, orig_idx, axis=0), (1, 0, 2))

    word_word = jnp.take(word_word, orig_idx, axis=0)
    ww_prob = jnp.take(ww_prob, orig_idx, axis=0)
    word_op = jnp.take(word_op, orig_idx, axis=0)
    wo_prob = jnp.take(wo_prob, orig_idx, axis=0)

    hidden = (jnp.stack([h_f, h_b], axis=0), jnp.stack([c_f, c_b], axis=0))
    return outputs, hidden, word_word, ww_prob, word_op, wo_prob


# ----------------------------------------------------------------------------
# Pure-JAX reference (same math) for a correctness sanity check.
# ----------------------------------------------------------------------------
def _ref_lstm_dir(x, mask, w_ih, w_hh, bias, H):
    def step(carry, inp):
        h, c = carry
        xt, mt = inp
        g = xt @ w_ih + h @ w_hh + bias
        i = jax.nn.sigmoid(g[:, :H]); f = jax.nn.sigmoid(g[:, H:2 * H])
        gg = jnp.tanh(g[:, 2 * H:3 * H]); o = jax.nn.sigmoid(g[:, 3 * H:])
        c_new = f * c + i * gg
        h_new = o * jnp.tanh(c_new)
        c = jnp.where(mt > 0, c_new, c)
        h = jnp.where(mt > 0, h_new, h)
        y = jnp.where(mt > 0, h_new, 0.0)
        return (h, c), y
    B = x.shape[1]
    (h, c), ys = jax.lax.scan(step, (jnp.zeros((B, H)), jnp.zeros((B, H))), (x, mask))
    return ys, h, c


def _ref_gcn_norm_ffn(x, adj, p, eps=1e-6):
    h1 = jax.nn.relu(adj @ (x @ p["gc1_w"]) + p["gc1_b"])
    o1 = adj @ (h1 @ p["gc2_w"]) + p["gc2_b"]
    mean = o1.mean(-1, keepdims=True)
    d = o1 - mean
    std = jnp.sqrt(jnp.sum(d * d, -1, keepdims=True))
    o2 = p["norm_a"] * d / (std + eps) + p["norm_b"] + x
    f = jax.nn.relu(o2 @ p["ffn_w1"] + p["ffn_b1"]) @ p["ffn_w2"] + p["ffn_b2"]
    return f + o2


if __name__ == "__main__":
    T, B, E, H, Nop = 8, 2, 32, 32, 4

    key = jax.random.PRNGKey(0)
    kp, kx, ko, km = jax.random.split(key, 4)
    params = init_params(kp, E, H, Nop)

    sorted_seqs = jax.random.normal(kx, (T, B, E), jnp.float32)       # embedded input
    sorted_len = jnp.array([T, T - 2], jnp.int32)                     # descending lens
    orig_idx = jnp.array([1, 0], jnp.int32)
    ops_embed = jax.random.normal(ko, (B, Nop, H), jnp.float32)
    sort_word_exist_mat = (jax.random.uniform(km, (B, T, T)) > 0.3).astype(jnp.int32)

    outs = encoder_forward(params, sorted_seqs, sorted_len, orig_idx,
                           ops_embed, sort_word_exist_mat, H)
    outs = jax.block_until_ready(outs)
    outputs, hidden, word_word, ww_prob, word_op, wo_prob = outs

    # reference check (LSTM + fused GCN/Norm/FFN path)
    mask = (jnp.arange(T)[:, None] < sorted_len[None, :]).astype(jnp.float32)[..., None]
    yf, hf, cf = _ref_lstm_dir(sorted_seqs, mask, params["lstm_wih_f"],
                               params["lstm_whh_f"], params["lstm_b_f"], H)
    yb, hb, cb = _ref_lstm_dir(sorted_seqs[::-1], mask[::-1], params["lstm_wih_b"],
                               params["lstm_whh_b"], params["lstm_b_b"], H)
    rnn_out = jnp.transpose(yf + yb[::-1], (1, 0, 2))
    all_word = jnp.transpose(sorted_seqs, (1, 0, 2))
    ww_hard, _ = know_encoder_ww(all_word, params, 0.5)
    adj = jnp.where(sort_word_exist_mat == 1, ww_hard[..., 0], 0.0)
    ref_out = jax.vmap(lambda x, a: _ref_gcn_norm_ffn(x, a, params))(rnn_out, adj)
    ref_out = jnp.take(jnp.transpose(ref_out, (1, 0, 2)), orig_idx, axis=1)

    assert outputs.shape == (T, B, H)
    assert jnp.allclose(outputs, ref_out, rtol=1e-2, atol=1e-2)
    assert jnp.allclose(hidden[0][0], hf, rtol=1e-2, atol=1e-2)
    assert jnp.allclose(hidden[1][1], cb, rtol=1e-2, atol=1e-2)
    assert word_word.shape == (B, T, T, 2) and word_op.shape == (B, T, Nop, 2)

    print("KERNEL_OK")
</pallas_src>

<mosaic_0001>
module attributes {stable_mosaic.version = 11 : i64} {
  func.func @_bilstm_kernel(%arg0: i32, %arg1: memref<1x2x128xf32, #tpu.memory_space<vmem>>, %arg2: memref<1x2x128xf32, #tpu.memory_space<vmem>>, %arg3: memref<32x128xf32, #tpu.memory_space<vmem>>, %arg4: memref<32x128xf32, #tpu.memory_space<vmem>>, %arg5: memref<2x32xi32, #tpu.memory_space<vmem>>, %arg6: memref<1x2x32xf32, #tpu.memory_space<vmem>>, %arg7: memref<1x2x32xf32, #tpu.memory_space<vmem>>, %arg8: memref<2x32xf32, #tpu.memory_space<vmem>>, %arg9: memref<2x32xf32, #tpu.memory_space<vmem>>, %arg10: memref<2x32xf32, #tpu.memory_space<vmem>>, %arg11: memref<2x32xf32, #tpu.memory_space<vmem>>, %arg12: memref<2x32xf32, #tpu.memory_space<vmem>>, %arg13: memref<2x32xf32, #tpu.memory_space<vmem>>, %arg14: memref<2x32xf32, #tpu.memory_space<vmem>>, %arg15: memref<2x32xf32, #tpu.memory_space<vmem>>) attributes {dimension_semantics = [#tpu.dimension_semantics<arbitrary>], iteration_bounds = array<i64: 8>, scalar_prefetch = 0 : i64, scratch_operands = 4 : i64, tpu.core_type = #tpu.core_type<tc>, window_params = [{transform_indices = @transform_0, window_bounds = array<i64: 1, 2, 128>}, {transform_indices = @transform_1, window_bounds = array<i64: 1, 2, 128>}, {pipeline_mode = #tpu.pipeline_mode<synchronous>, transform_indices = @transform_2, window_bounds = array<i64: 32, 128>}, {pipeline_mode = #tpu.pipeline_mode<synchronous>, transform_indices = @transform_3, window_bounds = array<i64: 32, 128>}, {pipeline_mode = #tpu.pipeline_mode<synchronous>, transform_indices = @transform_4, window_bounds = array<i64: 2, 32>}, {transform_indices = @transform_5, window_bounds = array<i64: 1, 2, 32>}, {transform_indices = @transform_6, window_bounds = array<i64: 1, 2, 32>}, {pipeline_mode = #tpu.pipeline_mode<synchronous>, transform_indices = @transform_7, window_bounds = array<i64: 2, 32>}, {pipeline_mode = #tpu.pipeline_mode<synchronous>, transform_indices = @transform_8, window_bounds = array<i64: 2, 32>}, {pipeline_mode = #tpu.pipeline_mode<synchronous>, transform_indices = @transform_9, window_bounds = array<i64: 2, 32>}, {pipeline_mode = #tpu.pipeline_mode<synchronous>, transform_indices = @transform_10, window_bounds = array<i64: 2, 32>}]} {
    %c0_i32 = arith.constant 0 : i32
    %0 = arith.cmpi eq, %arg0, %c0_i32 : i32
    %1 = arith.extui %0 : i1 to i32
    %c0_i32_0 = arith.constant 0 : i32
    %2 = arith.cmpi ne, %1, %c0_i32_0 : i32
    scf.if %2 {
      %cst_53 = arith.constant 0.000000e+00 : f32
      %98 = vector.broadcast %cst_53 : f32 to vector<2x32xf32>
      %c0_54 = arith.constant 0 : index
      %c0_55 = arith.constant 0 : index
      %99 = vector.load %arg12[%c0_54, %c0_55] : memref<2x32xf32, #tpu.memory_space<vmem>>, vector<2x32xf32>
      tpu.vector_store %arg12[%c0_54, %c0_55], %98 {strides = array<i32>} : memref<2x32xf32, #tpu.memory_space<vmem>>, vector<2x32xf32>,
      %cst_56 = arith.constant 0.000000e+00 : f32
      %100 = vector.broadcast %cst_56 : f32 to vector<2x32xf32>
      %c0_57 = arith.constant 0 : index
      %c0_58 = arith.constant 0 : index
      %101 = vector.load %arg13[%c0_57, %c0_58] : memref<2x32xf32, #tpu.memory_space<vmem>>, vector<2x32xf32>
      tpu.vector_store %arg13[%c0_57, %c0_58], %100 {strides = array<i32>} : memref<2x32xf32, #tpu.memory_space<vmem>>, vector<2x32xf32>,
      %cst_59 = arith.constant 0.000000e+00 : f32
      %102 = vector.broadcast %cst_59 : f32 to vector<2x32xf32>
      %c0_60 = arith.constant 0 : index
      %c0_61 = arith.constant 0 : index
      %103 = vector.load %arg14[%c0_60, %c0_61] : memref<2x32xf32, #tpu.memory_space<vmem>>, vector<2x32xf32>
      tpu.vector_store %arg14[%c0_60, %c0_61], %102 {strides = array<i32>} : memref<2x32xf32, #tpu.memory_space<vmem>>, vector<2x32xf32>,
      %cst_62 = arith.constant 0.000000e+00 : f32
      %104 = vector.broadcast %cst_62 : f32 to vector<2x32xf32>
      %c0_63 = arith.constant 0 : index
      %c0_64 = arith.constant 0 : index
      %105 = vector.load %arg15[%c0_63, %c0_64] : memref<2x32xf32, #tpu.memory_space<vmem>>, vector<2x32xf32>
      tpu.vector_store %arg15[%c0_63, %c0_64], %104 {strides = array<i32>} : memref<2x32xf32, #tpu.memory_space<vmem>>, vector<2x32xf32>,
    } else {
    }
    %c0 = arith.constant 0 : index
    %c0_1 = arith.constant 0 : index
    %3 = vector.load %arg5[%c0, %c0_1] : memref<2x32xi32, #tpu.memory_space<vmem>>, vector<2x32xi32>
    %4 = vector.broadcast %arg0 : i32 to vector<2x32xi32>
    %5 = arith.cmpi slt, %4, %3 : vector<2x32xi32>
    %c7_i32 = arith.constant 7 : i32
    %6 = arith.subi %c7_i32, %arg0 : i32
    %7 = vector.broadcast %6 : i32 to vector<2x32xi32>
    %8 = arith.cmpi slt, %7, %3 : vector<2x32xi32>
    %c0_2 = arith.constant 0 : index
    %c0_3 = arith.constant 0 : index
    %c0_4 = arith.constant 0 : index
    %9 = vector.load %arg1[%c0_2, %c0_3, %c0_4] : memref<1x2x128xf32, #tpu.memory_space<vmem>>, vector<1x2x128xf32>
    %10 = vector.shape_cast %9 : vector<1x2x128xf32> to vector<2x128xf32>
    %c0_5 = arith.constant 0 : index
    %c0_6 = arith.constant 0 : index
    %11 = vector.load %arg12[%c0_5, %c0_6] : memref<2x32xf32, #tpu.memory_space<vmem>>, vector<2x32xf32>
    %c0_7 = arith.constant 0 : index
    %c0_8 = arith.constant 0 : index
    %12 = vector.load %arg3[%c0_7, %c0_8] : memref<32x128xf32, #tpu.memory_space<vmem>>, vector<32x128xf32>
    %cst = arith.constant dense<0.000000e+00> : vector<2x128xf32>
    %13 = tpu.matmul %11, %12, %cst {dimension_numbers = #tpu.dot_dimension_numbers<[1], [0], [0], [1], [0, 0, 1, 1], [], []>} : vector<2x32xf32>, vector<32x128xf32>, vector<2x128xf32> -> vector<2x128xf32>
    %14 = arith.addf %10, %13 : vector<2x128xf32>
    %c0_9 = arith.constant 0 : index
    %c0_10 = arith.constant 0 : index
    %c0_11 = arith.constant 0 : index
    %15 = vector.load %arg2[%c0_9, %c0_10, %c0_11] : memref<1x2x128xf32, #tpu.memory_space<vmem>>, vector<1x2x128xf32>
    %16 = vector.shape_cast %15 : vector<1x2x128xf32> to vector<2x128xf32>
    %c0_12 = arith.constant 0 : index
    %c0_13 = arith.constant 0 : index
    %17 = vector.load %arg14[%c0_12, %c0_13] : memref<2x32xf32, #tpu.memory_space<vmem>>, vector<2x32xf32>
    %c0_14 = arith.constant 0 : index
    %c0_15 = arith.constant 0 : index
    %18 = vector.load %arg4[%c0_14, %c0_15] : memref<32x128xf32, #tpu.memory_space<vmem>>, vector<32x128xf32>
    %cst_16 = arith.constant dense<0.000000e+00> : vector<2x128xf32>
    %19 = tpu.matmul %17, %18, %cst_16 {dimension_numbers = #tpu.dot_dimension_numbers<[1], [0], [0], [1], [0, 0, 1, 1], [], []>} : vector<2x32xf32>, vector<32x128xf32>, vector<2x128xf32> -> vector<2x128xf32>
    %20 = arith.addf %16, %19 : vector<2x128xf32>
    %c0_17 = arith.constant 0 : index
    %c0_18 = arith.constant 0 : index
    %21 = vector.load %arg13[%c0_17, %c0_18] : memref<2x32xf32, #tpu.memory_space<vmem>>, vector<2x32xf32>
    %22 = vector.extract_strided_slice %14 {offsets = [0, 0], sizes = [2, 32], strides = [1, 1]} : vector<2x128xf32> to vector<2x32xf32>
    %23 = arith.negf %22 : vector<2x32xf32>
    %24 = math.exp %23 : vector<2x32xf32>
    %cst_19 = arith.constant 1.000000e+00 : f32
    %25 = vector.broadcast %cst_19 : f32 to vector<2x32xf32>
    %26 = arith.addf %25, %24 : vector<2x32xf32>
    %27 = arith.divf %25, %26 : vector<2x32xf32>
    %28 = vector.extract_strided_slice %14 {offsets = [0, 32], sizes = [2, 32], strides = [1, 1]} : vector<2x128xf32> to vector<2x32xf32>
    %29 = arith.negf %28 : vector<2x32xf32>
    %30 = math.exp %29 : vector<2x32xf32>
    %cst_20 = arith.constant 1.000000e+00 : f32
    %31 = vector.broadcast %cst_20 : f32 to vector<2x32xf32>
    %32 = arith.addf %31, %30 : vector<2x32xf32>
    %33 = arith.divf %31, %32 : vector<2x32xf32>
    %34 = vector.extract_strided_slice %14 {offsets = [0, 64], sizes = [2, 32], strides = [1, 1]} : vector<2x128xf32> to vector<2x32xf32>
    %35 = math.tanh %34 : vector<2x32xf32>
    %36 = vector.extract_strided_slice %14 {offsets = [0, 96], sizes = [2, 32], strides = [1, 1]} : vector<2x128xf32> to vector<2x32xf32>
    %37 = arith.negf %36 : vector<2x32xf32>
    %38 = math.exp %37 : vector<2x32xf32>
    %cst_21 = arith.constant 1.000000e+00 : f32
    %39 = vector.broadcast %cst_21 : f32 to vector<2x32xf32>
    %40 = arith.addf %39, %38 : vector<2x32xf32>
    %41 = arith.divf %39, %40 : vector<2x32xf32>
    %42 = arith.mulf %33, %21 : vector<2x32xf32>
    %43 = arith.mulf %27, %35 : vector<2x32xf32>
    %44 = arith.addf %42, %43 : vector<2x32xf32>
    %45 = math.tanh %44 : vector<2x32xf32>
    %46 = arith.mulf %41, %45 : vector<2x32xf32>
    %c0_22 = arith.constant 0 : index
    %c0_23 = arith.constant 0 : index
    %47 = vector.load %arg15[%c0_22, %c0_23] : memref<2x32xf32, #tpu.memory_space<vmem>>, vector<2x32xf32>
    %48 = vector.extract_strided_slice %20 {offsets = [0, 0], sizes = [2, 32], strides = [1, 1]} : vector<2x128xf32> to vector<2x32xf32>
    %49 = arith.negf %48 : vector<2x32xf32>
    %50 = math.exp %49 : vector<2x32xf32>
    %cst_24 = arith.constant 1.000000e+00 : f32
    %51 = vector.broadcast %cst_24 : f32 to vector<2x32xf32>
    %52 = arith.addf %51, %50 : vector<2x32xf32>
    %53 = arith.divf %51, %52 : vector<2x32xf32>
    %54 = vector.extract_strided_slice %20 {offsets = [0, 32], sizes = [2, 32], strides = [1, 1]} : vector<2x128xf32> to vector<2x32xf32>
    %55 = arith.negf %54 : vector<2x32xf32>
    %56 = math.exp %55 : vector<2x32xf32>
    %cst_25 = arith.constant 1.000000e+00 : f32
    %57 = vector.broadcast %cst_25 : f32 to vector<2x32xf32>
    %58 = arith.addf %57, %56 : vector<2x32xf32>
    %59 = arith.divf %57, %58 : vector<2x32xf32>
    %60 = vector.extract_strided_slice %20 {offsets = [0, 64], sizes = [2, 32], strides = [1, 1]} : vector<2x128xf32> to vector<2x32xf32>
    %61 = math.tanh %60 : vector<2x32xf32>
    %62 = vector.extract_strided_slice %20 {offsets = [0, 96], sizes = [2, 32], strides = [1, 1]} : vector<2x128xf32> to vector<2x32xf32>
    %63 = arith.negf %62 : vector<2x32xf32>
    %64 = math.exp %63 : vector<2x32xf32>
    %cst_26 = arith.constant 1.000000e+00 : f32
    %65 = vector.broadcast %cst_26 : f32 to vector<2x32xf32>
    %66 = arith.addf %65, %64 : vector<2x32xf32>
    %67 = arith.divf %65, %66 : vector<2x32xf32>
    %68 = arith.mulf %59, %47 : vector<2x32xf32>
    %69 = arith.mulf %53, %61 : vector<2x32xf32>
    %70 = arith.addf %68, %69 : vector<2x32xf32>
    %71 = math.tanh %70 : vector<2x32xf32>
    %72 = arith.mulf %67, %71 : vector<2x32xf32>
    %c0_27 = arith.constant 0 : index
    %c0_28 = arith.constant 0 : index
    %73 = vector.load %arg12[%c0_27, %c0_28] : memref<2x32xf32, #tpu.memory_space<vmem>>, vector<2x32xf32>
    %74 = arith.select %5, %46, %73 : vector<2x32xi1>, vector<2x32xf32>
    %c0_29 = arith.constant 0 : index
    %c0_30 = arith.constant 0 : index
    %75 = vector.load %arg12[%c0_29, %c0_30] : memref<2x32xf32, #tpu.memory_space<vmem>>, vector<2x32xf32>
    tpu.vector_store %arg12[%c0_29, %c0_30], %74 {strides = array<i32>} : memref<2x32xf32, #tpu.memory_space<vmem>>, vector<2x32xf32>,
    %c0_31 = arith.constant 0 : index
    %c0_32 = arith.constant 0 : index
    %76 = vector.load %arg13[%c0_31, %c0_32] : memref<2x32xf32, #tpu.memory_space<vmem>>, vector<2x32xf32>
    %77 = arith.select %5, %44, %76 : vector<2x32xi1>, vector<2x32xf32>
    %c0_33 = arith.constant 0 : index
    %c0_34 = arith.constant 0 : index
    %78 = vector.load %arg13[%c0_33, %c0_34] : memref<2x32xf32, #tpu.memory_space<vmem>>, vector<2x32xf32>
    tpu.vector_store %arg13[%c0_33, %c0_34], %77 {strides = array<i32>} : memref<2x32xf32, #tpu.memory_space<vmem>>, vector<2x32xf32>,
    %c0_35 = arith.constant 0 : index
    %c0_36 = arith.constant 0 : index
    %79 = vector.load %arg14[%c0_35, %c0_36] : memref<2x32xf32, #tpu.memory_space<vmem>>, vector<2x32xf32>
    %80 = arith.select %8, %72, %79 : vector<2x32xi1>, vector<2x32xf32>
    %c0_37 = arith.constant 0 : index
    %c0_38 = arith.constant 0 : index
    %81 = vector.load %arg14[%c0_37, %c0_38] : memref<2x32xf32, #tpu.memory_space<vmem>>, vector<2x32xf32>
    tpu.vector_store %arg14[%c0_37, %c0_38], %80 {strides = array<i32>} : memref<2x32xf32, #tpu.memory_space<vmem>>, vector<2x32xf32>,
    %c0_39 = arith.constant 0 : index
    %c0_40 = arith.constant 0 : index
    %82 = vector.load %arg15[%c0_39, %c0_40] : memref<2x32xf32, #tpu.memory_space<vmem>>, vector<2x32xf32>
    %83 = arith.select %8, %70, %82 : vector<2x32xi1>, vector<2x32xf32>
    %c0_41 = arith.constant 0 : index
    %c0_42 = arith.constant 0 : index
    %84 = vector.load %arg15[%c0_41, %c0_42] : memref<2x32xf32, #tpu.memory_space<vmem>>, vector<2x32xf32>
    tpu.vector_store %arg15[%c0_41, %c0_42], %83 {strides = array<i32>} : memref<2x32xf32, #tpu.memory_space<vmem>>, vector<2x32xf32>,
    %cst_43 = arith.constant 0.000000e+00 : f32
    %85 = vector.broadcast %cst_43 : f32 to vector<2x32xf32>
    %86 = arith.select %5, %46, %85 : vector<2x32xi1>, vector<2x32xf32>
    %c0_44 = arith.constant 0 : index
    %c0_45 = arith.constant 0 : index
    %c0_46 = arith.constant 0 : index
    %87 = vector.load %arg6[%c0_44, %c0_45, %c0_46] : memref<1x2x32xf32, #tpu.memory_space<vmem>>, vector<1x2x32xf32>
    %88 = vector.shape_cast %87 : vector<1x2x32xf32> to vector<2x32xf32>
    %89 = vector.shape_cast %86 : vector<2x32xf32> to vector<1x2x32xf32>
    tpu.vector_store %arg6[%c0_44, %c0_45, %c0_46], %89 {strides = array<i32>} : memref<1x2x32xf32, #tpu.memory_space<vmem>>, vector<1x2x32xf32>,
    %cst_47 = arith.constant 0.000000e+00 : f32
    %90 = vector.broadcast %cst_47 : f32 to vector<2x32xf32>
    %91 = arith.select %8, %72, %90 : vector<2x32xi1>, vector<2x32xf32>
    %c0_48 = arith.constant 0 : index
    %c0_49 = arith.constant 0 : index
    %c0_50 = arith.constant 0 : index
    %92 = vector.load %arg7[%c0_48, %c0_49, %c0_50] : memref<1x2x32xf32, #tpu.memory_space<vmem>>, vector<1x2x32xf32>
    %93 = vector.shape_cast %92 : vector<1x2x32xf32> to vector<2x32xf32>
    %94 = vector.shape_cast %91 : vector<2x32xf32> to vector<1x2x32xf32>
    tpu.vector_store %arg7[%c0_48, %c0_49, %c0_50], %94 {strides = array<i32>} : memref<1x2x32xf32, #tpu.memory_space<vmem>>, vector<1x2x32xf32>,
    %c7_i32_51 = arith.constant 7 : i32
    %95 = arith.cmpi eq, %arg0, %c7_i32_51 : i32
    %96 = arith.extui %95 : i1 to i32
    %c0_i32_52 = arith.constant 0 : i32
    %97 = arith.cmpi ne, %96, %c0_i32_52 : i32
    scf.if %97 {
      %c0_53 = arith.constant 0 : index
      %c0_54 = arith.constant 0 : index
      %98 = vector.load %arg12[%c0_53, %c0_54] : memref<2x32xf32, #tpu.memory_space<vmem>>, vector<2x32xf32>
      %c0_55 = arith.constant 0 : index
      %c0_56 = arith.constant 0 : index
      %99 = vector.load %arg8[%c0_55, %c0_56] : memref<2x32xf32, #tpu.memory_space<vmem>>, vector<2x32xf32>
      tpu.vector_store %arg8[%c0_55, %c0_56], %98 {strides = array<i32>} : memref<2x32xf32, #tpu.memory_space<vmem>>, vector<2x32xf32>,
      %c0_57 = arith.constant 0 : index
      %c0_58 = arith.constant 0 : index
      %100 = vector.load %arg13[%c0_57, %c0_58] : memref<2x32xf32, #tpu.memory_space<vmem>>, vector<2x32xf32>
      %c0_59 = arith.constant 0 : index
      %c0_60 = arith.constant 0 : index
      %101 = vector.load %arg9[%c0_59, %c0_60] : memref<2x32xf32, #tpu.memory_space<vmem>>, vector<2x32xf32>
      tpu.vector_store %arg9[%c0_59, %c0_60], %100 {strides = array<i32>} : memref<2x32xf32, #tpu.memory_space<vmem>>, vector<2x32xf32>,
      %c0_61 = arith.constant 0 : index
      %c0_62 = arith.constant 0 : index
      %102 = vector.load %arg14[%c0_61, %c0_62] : memref<2x32xf32, #tpu.memory_space<vmem>>, vector<2x32xf32>
      %c0_63 = arith.constant 0 : index
      %c0_64 = arith.constant 0 : index
      %103 = vector.load %arg10[%c0_63, %c0_64] : memref<2x32xf32, #tpu.memory_space<vmem>>, vector<2x32xf32>
      tpu.vector_store %arg10[%c0_63, %c0_64], %102 {strides = array<i32>} : memref<2x32xf32, #tpu.memory_space<vmem>>, vector<2x32xf32>,
      %c0_65 = arith.constant 0 : index
      %c0_66 = arith.constant 0 : index
      %104 = vector.load %arg15[%c0_65, %c0_66] : memref<2x32xf32, #tpu.memory_space<vmem>>, vector<2x32xf32>
      %c0_67 = arith.constant 0 : index
      %c0_68 = arith.constant 0 : index
      %105 = vector.load %arg11[%c0_67, %c0_68] : memref<2x32xf32, #tpu.memory_space<vmem>>, vector<2x32xf32>
      tpu.vector_store %arg11[%c0_67, %c0_68], %104 {strides = array<i32>} : memref<2x32xf32, #tpu.memory_space<vmem>>, vector<2x32xf32>,
    } else {
    }
    return
  }
  func.func @transform_0(%arg0: i32) -> (i32, i32, i32) {
    %c0_i32 = arith.constant 0 : i32
    %c0_i32_0 = arith.constant 0 : i32
    %c0_i32_1 = arith.constant 0 : i32
    return %arg0, %c0_i32, %c0_i32_0 : i32, i32, i32
  }
  func.func @transform_1(%arg0: i32) -> (i32, i32, i32) {
    %c7_i32 = arith.constant 7 : i32
    %0 = arith.subi %c7_i32, %arg0 : i32
    %c0_i32 = arith.constant 0 : i32
    %c1_i32 = arith.constant 1 : i32
    %c0_i32_0 = arith.constant 0 : i32
    return %0, %c0_i32, %c1_i32 : i32, i32, i32
  }
  func.func @transform_2(%arg0: i32) -> (i32, i32) {
    %c0_i32 = arith.constant 0 : i32
    %c0_i32_0 = arith.constant 0 : i32
    %c0_i32_1 = arith.constant 0 : i32
    return %c0_i32, %c0_i32_0 : i32, i32
  }
  func.func @transform_3(%arg0: i32) -> (i32, i32) {
    %c0_i32 = arith.constant 0 : i32
    %c0_i32_0 = arith.constant 0 : i32
    %c0_i32_1 = arith.constant 0 : i32
    return %c0_i32, %c0_i32_0 : i32, i32
  }
  func.func @transform_4(%arg0: i32) -> (i32, i32) {
    %c0_i32 = arith.constant 0 : i32
    %c0_i32_0 = arith.constant 0 : i32
    %c0_i32_1 = arith.constant 0 : i32
    return %c0_i32, %c0_i32_0 : i32, i32
  }
  func.func @transform_5(%arg0: i32) -> (i32, i32, i32) {
    %c0_i32 = arith.constant 0 : i32
    %c0_i32_0 = arith.constant 0 : i32
    %c0_i32_1 = arith.constant 0 : i32
    return %arg0, %c0_i32, %c0_i32_0 : i32, i32, i32
  }
  func.func @transform_6(%arg0: i32) -> (i32, i32, i32) {
    %c7_i32 = arith.constant 7 : i32
    %0 = arith.subi %c7_i32, %arg0 : i32
    %c0_i32 = arith.constant 0 : i32
    %c0_i32_0 = arith.constant 0 : i32
    %c0_i32_1 = arith.constant 0 : i32
    return %0, %c0_i32, %c0_i32_0 : i32, i32, i32
  }
  func.func @transform_7(%arg0: i32) -> (i32, i32) {
    %c0_i32 = arith.constant 0 : i32
    %c0_i32_0 = arith.constant 0 : i32
    %c0_i32_1 = arith.constant 0 : i32
    return %c0_i32, %c0_i32_0 : i32, i32
  }
  func.func @transform_8(%arg0: i32) -> (i32, i32) {
    %c0_i32 = arith.constant 0 : i32
    %c0_i32_0 = arith.constant 0 : i32
    %c0_i32_1 = arith.constant 0 : i32
    return %c0_i32, %c0_i32_0 : i32, i32
  }
  func.func @transform_9(%arg0: i32) -> (i32, i32) {
    %c0_i32 = arith.constant 0 : i32
    %c0_i32_0 = arith.constant 0 : i32
    %c0_i32_1 = arith.constant 0 : i32
    return %c0_i32, %c0_i32_0 : i32, i32
  }
  func.func @transform_10(%arg0: i32) -> (i32, i32) {
    %c0_i32 = arith.constant 0 : i32
    %c0_i32_0 = arith.constant 0 : i32
    %c0_i32_1 = arith.constant 0 : i32
    return %c0_i32, %c0_i32_0 : i32, i32
  }
}

</mosaic_0001>

<llo_original>
// kernel: tpu_custom_call.1
$region0: #{tpu_custom_call.1}
  #allocation0 [shape = 'u32[]', space=smem, size = 0x4, offset = 0x4, fixed_abs, tag = 'smem constant byte address 0x4 - core index']
  #allocation1 [shape = 'u32[144,128]{1,0:T(1,128)}', space=vmem, size = 0x12000, scoped, tag = 'internal scratch']
  #allocation2 [shape = 'f32[2,32]{1,0:T(2,128)}', space=vmem, size = 0x400, scoped, tag = 'scratch operand']
  #allocation3 [shape = 'f32[2,32]{1,0:T(2,128)}', space=vmem, size = 0x400, scoped, tag = 'scratch operand']
  #allocation4 [shape = 'f32[2,32]{1,0:T(2,128)}', space=vmem, size = 0x400, scoped, tag = 'scratch operand']
  #allocation5 [shape = 'f32[2,32]{1,0:T(2,128)}', space=vmem, size = 0x400, scoped, tag = 'scratch operand']
  %s0 = inlined_call_operand.hbm [shape: f32[8,2,256], index: 0, kind: input, shape index: {}]
  %s1 = inlined_call_operand.hbm [shape: f32[8,2,256], index: 1, kind: input, shape index: {}]
  %s2 = inlined_call_operand.hbm [shape: f32[32,128], index: 2, kind: input, shape index: {}]
  %s3 = inlined_call_operand.hbm [shape: f32[32,128], index: 3, kind: input, shape index: {}]
  %s4 = inlined_call_operand.vmem [shape: s32[2,32], index: 4, kind: input, shape index: {}]
  %s5 = inlined_call_operand.hbm [shape: f32[8,2,32], index: 5, kind: output, shape index: {0}]
  %s6 = inlined_call_operand.hbm [shape: f32[8,2,32], index: 6, kind: output, shape index: {1}]
  %s7 = inlined_call_operand.hbm [shape: f32[2,32], index: 7, kind: output, shape index: {2}]
  %s8 = inlined_call_operand.hbm [shape: f32[2,32], index: 8, kind: output, shape index: {3}]
  %s9 = inlined_call_operand.hbm [shape: f32[2,32], index: 9, kind: output, shape index: {4}]
  %s10 = inlined_call_operand.hbm [shape: f32[2,32], index: 10, kind: output, shape index: {5}]
  %11 = xla_tuple %s5, %s6, %s7, %s8, %s9, %s10
  %s12 = sld [smem:[#allocation0]]
  $region117: #{tpu_custom_call.1} parent=0
    _
  %s14 = ssub.s32 1, %s12
  %s15 = scalar_select 0, %s14, %s12
  $region1: #{tpu_custom_call.1} parent=0
    #allocation6 [shape = 'u8[2048]{0}', space=vmem, size = 0x800, scoped, tag = 'input window, operand 0']
    #allocation7 [shape = 's32[2]{0}', space=sflag, size = 0x8, scoped, tag = 'scoped memory for tpu_custom_call.1']
    #allocation8 [shape = 's32[2]{0}', space=sflag, size = 0x8, scoped, tag = 'scoped memory for tpu_custom_call.1']
    #allocation9 [shape = 'u8[2048]{0}', space=vmem, size = 0x800, scoped, tag = 'input window, operand 1']
    #allocation10 [shape = 's32[2]{0}', space=sflag, size = 0x8, scoped, tag = 'scoped memory for tpu_custom_call.1']
    #allocation11 [shape = 'u8[16384]{0}', space=vmem, size = 0x4000, scoped, tag = 'input window, operand 2, single buffered']
    #allocation12 [shape = 'u8[16384]{0}', space=vmem, size = 0x4000, scoped, tag = 'input window, operand 3, single buffered']
    #allocation13 [shape = 's32[1]{0}', space=sflag, size = 0x4, scoped, tag = 'scoped memory for tpu_custom_call.1']
    #allocation14 [shape = 'u8[2048]{0}', space=vmem, size = 0x800, scoped, tag = 'output window, operand 0']
    #allocation15 [shape = 'u8[2048]{0}', space=vmem, size = 0x800, scoped, tag = 'output window, operand 1']
    #allocation16 [shape = 's32[2]{0}', space=sflag, size = 0x8, scoped, tag = 'scoped memory for tpu_custom_call.1']
    #allocation17 [shape = 'u8[1024]{0}', space=vmem, size = 0x400, scoped, tag = 'output window, operand 2, single buffered']
    #allocation18 [shape = 'u8[1024]{0}', space=vmem, size = 0x400, scoped, tag = 'output window, operand 3, single buffered']
    #allocation19 [shape = 's32[1]{0}', space=sflag, size = 0x4, scoped, tag = 'scoped memory for tpu_custom_call.1']
    #allocation20 [shape = 'u8[1024]{0}', space=vmem, size = 0x400, scoped, tag = 'output window, operand 4, single buffered']
    #allocation21 [shape = 'u8[1024]{0}', space=vmem, size = 0x400, scoped, tag = 'output window, operand 5, single buffered']
    #allocation22 [shape = 's32[1]{0}', space=sflag, size = 0x4, scoped, tag = 'scoped memory for tpu_custom_call.1']
    %16 = vsyncpa [#allocation7], 0
    %s17 = scalar_lea.sflag [#allocation7], 1
    %18 = vsyncpa %s17, 0
    %19 = vsyncpa [#allocation10], 0
    %s20 = scalar_lea.sflag [#allocation10], 1
    %21 = vsyncpa %s20, 0
    %22 = vsyncpa [#allocation13], 0
    %23 = vsyncpa [#allocation8], 0
    %s24 = scalar_lea.sflag [#allocation8], 1
    %25 = vsyncpa %s24, 0
    %26 = vsyncpa [#allocation16], 0
    %s27 = scalar_lea.sflag [#allocation16], 1
    %28 = vsyncpa %s27, 0
    %29 = vsyncpa [#allocation19], 0
    %30 = vsyncpa [#allocation22], 0
    loop: start=0, step=1, limit=10
    $region2: #{tpu_custom_call.1} parent=1 // loop_pre_header
      _
    $region3: #{tpu_custom_call.1} parent=1 // loop_header
      %s32 = sphi 0, %s36
      %p33 = scmp.ge.s32.totalorder %s32, 10
      %s42 = sphi 0, %s44
      %s45 = sphi 0, %s42
      %s46 = sphi 0, %s45
      %s62 = sphi 0, %s46
      %s70 = sphi 0, %s72
      %s73 = sphi 0, %s70
      %s74 = sphi 0, %s73
      %s90 = sphi 0, %s74
      %s94 = sphi 0, %s94
      %s96 = sphi 0, %s94
      %s97 = sphi 0, %s96
      %s111 = sphi 0, %s97
      %s115 = sphi 0, %s115
      %s117 = sphi 0, %s115
      %s118 = sphi 0, %s117
      %s132 = sphi 0, %s118
      %s136 = sphi 0, %s136
      %s138 = sphi 0, %s136
      %s139 = sphi 0, %s138
      %s153 = sphi 0, %s139
      %s159 = sphi 0, %s161
      %s162 = sphi 0, %s159
      %s163 = sphi 0, %s162
      %s179 = sphi 0, %s163
      %s187 = sphi 0, %s189
      %s190 = sphi 0, %s187
      %s191 = sphi 0, %s190
      %s207 = sphi 0, %s191
      %s211 = sphi 0, %s211
      %s213 = sphi 0, %s211
      %s214 = sphi 0, %s213
      %s228 = sphi 0, %s214
      %s232 = sphi 0, %s232
      %s234 = sphi 0, %s232
      %s235 = sphi 0, %s234
      %s249 = sphi 0, %s235
      %s253 = sphi 0, %s253
      %s255 = sphi 0, %s253
      %s256 = sphi 0, %s255
      %s270 = sphi 0, %s256
      %s274 = sphi 0, %s274
      %s276 = sphi 0, %s274
      %s277 = sphi 0, %s276
      %s291 = sphi 0, %s277
    $region4: #{tpu_custom_call.1} parent=1 // loop_header_branch
      %35 = sbr.rel (%p33) target = $region8
    $region5: #{tpu_custom_call.1} parent=1 // loop_body
      %s37 = ssub.s32 %s32, 1
      %s38 = ssub.s32 %s32, 2
      %s39 = sadd.s32 %s32, 1
      %s40 = ssub.s32 %s32, %s39
      %p41 = scmp.eq.s32.totalorder %s40, 0
      %s43 = sadd.s32 %s42, 1
      %s44 = scalar_select %p41, %s42, %s43
      %p47 = pneg %p41
      %p48 = scmp.eq.s32.totalorder %s32, 7
      %p49 = por %p47, %p48
      %p50 = scmp.ne.s32.totalorder %s42, %s45
      %p51 = scmp.eq.s32.totalorder %s32, 0
      %p52 = por %p50, %p51
      %p53 = scmp.ne.s32.totalorder %s42, %s45
      %p54 = scmp.eq.s32.totalorder %s37, 7
      %p55 = por %p53, %p54
      %p56 = scmp.ne.s32.totalorder %s45, %s46
      %p57 = scmp.eq.s32.totalorder %s37, 0
      %p58 = por %p56, %p57
      %p59 = scmp.ne.s32.totalorder %s45, %s46
      %p60 = scmp.eq.s32.totalorder %s38, 7
      %p61 = por %p59, %p60
      %p63 = scmp.ne.s32.totalorder %s46, %s62
      %p64 = scmp.eq.s32.totalorder %s38, 0
      %p65 = por %p63, %p64
      %s66 = ssub.s32 7, %s32
      %s67 = ssub.s32 7, %s39
      %s68 = ssub.s32 %s66, %s67
      %p69 = scmp.eq.s32.totalorder %s68, 0
      %s71 = sadd.s32 %s70, 1
      %s72 = scalar_select %p69, %s70, %s71
      %p75 = pneg %p69
      %p76 = scmp.eq.s32.totalorder %s32, 7
      %p77 = por %p75, %p76
      %p78 = scmp.ne.s32.totalorder %s70, %s73
      %p79 = scmp.eq.s32.totalorder %s32, 0
      %p80 = por %p78, %p79
      %p81 = scmp.ne.s32.totalorder %s70, %s73
      %p82 = scmp.eq.s32.totalorder %s37, 7
      %p83 = por %p81, %p82
      %p84 = scmp.ne.s32.totalorder %s73, %s74
      %p85 = scmp.eq.s32.totalorder %s37, 0
      %p86 = por %p84, %p85
      %p87 = scmp.ne.s32.totalorder %s73, %s74
      %p88 = scmp.eq.s32.totalorder %s38, 7
      %p89 = por %p87, %p88
      %p91 = scmp.ne.s32.totalorder %s74, %s90
      %p92 = scmp.eq.s32.totalorder %s38, 0
      %p93 = por %p91, %p92
      %s95 = sadd.s32 %s94, 1
      %p98 = scmp.eq.s32.totalorder %s32, 7
      %p99 = scmp.ne.s32.totalorder %s94, %s96
      %p100 = scmp.eq.s32.totalorder %s32, 0
      %p101 = por %p99, %p100
      %p102 = scmp.ne.s32.totalorder %s94, %s96
      %p103 = scmp.eq.s32.totalorder %s37, 7
      %p104 = por %p102, %p103
      %p105 = scmp.ne.s32.totalorder %s96, %s97
      %p106 = scmp.eq.s32.totalorder %s37, 0
      %p107 = por %p105, %p106
      %p108 = scmp.ne.s32.totalorder %s96, %s97
      %p109 = scmp.eq.s32.totalorder %s38, 7
      %p110 = por %p108, %p109
      %p112 = scmp.ne.s32.totalorder %s97, %s111
      %p113 = scmp.eq.s32.totalorder %s38, 0
      %p114 = por %p112, %p113
      %s116 = sadd.s32 %s115, 1
      %p119 = scmp.eq.s32.totalorder %s32, 7
      %p120 = scmp.ne.s32.totalorder %s115, %s117
      %p121 = scmp.eq.s32.totalorder %s32, 0
      %p122 = por %p120, %p121
      %p123 = scmp.ne.s32.totalorder %s115, %s117
      %p124 = scmp.eq.s32.totalorder %s37, 7
      %p125 = por %p123, %p124
      %p126 = scmp.ne.s32.totalorder %s117, %s118
      %p127 = scmp.eq.s32.totalorder %s37, 0
      %p128 = por %p126, %p127
      %p129 = scmp.ne.s32.totalorder %s117, %s118
      %p130 = scmp.eq.s32.totalorder %s38, 7
      %p131 = por %p129, %p130
      %p133 = scmp.ne.s32.totalorder %s118, %s132
      %p134 = scmp.eq.s32.totalorder %s38, 0
      %p135 = por %p133, %p134
      %s137 = sadd.s32 %s136, 1
      %p140 = scmp.eq.s32.totalorder %s32, 7
      %p141 = scmp.ne.s32.totalorder %s136, %s138
      %p142 = scmp.eq.s32.totalorder %s32, 0
      %p143 = por %p141, %p142
      %p144 = scmp.ne.s32.totalorder %s136, %s138
      %p145 = scmp.eq.s32.totalorder %s37, 7
      %p146 = por %p144, %p145
      %p147 = scmp.ne.s32.totalorder %s138, %s139
      %p148 = scmp.eq.s32.totalorder %s37, 0
      %p149 = por %p147, %p148
      %p150 = scmp.ne.s32.totalorder %s138, %s139
      %p151 = scmp.eq.s32.totalorder %s38, 7
      %p152 = por %p150, %p151
      %p154 = scmp.ne.s32.totalorder %s139, %s153
      %p155 = scmp.eq.s32.totalorder %s38, 0
      %p156 = por %p154, %p155
      %s157 = ssub.s32 %s32, %s39
      %p158 = scmp.eq.s32.totalorder %s157, 0
      %s160 = sadd.s32 %s159, 1
      %s161 = scalar_select %p158, %s159, %s160
      %p164 = pneg %p158
      %p165 = scmp.eq.s32.totalorder %s32, 7
      %p166 = por %p164, %p165
      %p167 = scmp.ne.s32.totalorder %s159, %s162
      %p168 = scmp.eq.s32.totalorder %s32, 0
      %p169 = por %p167, %p168
      %p170 = scmp.ne.s32.totalorder %s159, %s162
      %p171 = scmp.eq.s32.totalorder %s37, 7
      %p172 = por %p170, %p171
      %p173 = scmp.ne.s32.totalorder %s162, %s163
      %p174 = scmp.eq.s32.totalorder %s37, 0
      %p175 = por %p173, %p174
      %p176 = scmp.ne.s32.totalorder %s162, %s163
      %p177 = scmp.eq.s32.totalorder %s38, 7
      %p178 = por %p176, %p177
      %p180 = scmp.ne.s32.totalorder %s163, %s179
      %p181 = scmp.eq.s32.totalorder %s38, 0
      %p182 = por %p180, %p181
      %s183 = ssub.s32 7, %s32
      %s184 = ssub.s32 7, %s39
      %s185 = ssub.s32 %s183, %s184
      %p186 = scmp.eq.s32.totalorder %s185, 0
      %s188 = sadd.s32 %s187, 1
      %s189 = scalar_select %p186, %s187, %s188
      %p192 = pneg %p186
      %p193 = scmp.eq.s32.totalorder %s32, 7
      %p194 = por %p192, %p193
      %p195 = scmp.ne.s32.totalorder %s187, %s190
      %p196 = scmp.eq.s32.totalorder %s32, 0
      %p197 = por %p195, %p196
      %p198 = scmp.ne.s32.totalorder %s187, %s190
      %p199 = scmp.eq.s32.totalorder %s37, 7
      %p200 = por %p198, %p199
      %p201 = scmp.ne.s32.totalorder %s190, %s191
      %p202 = scmp.eq.s32.totalorder %s37, 0
      %p203 = por %p201, %p202
      %p204 = scmp.ne.s32.totalorder %s190, %s191
      %p205 = scmp.eq.s32.totalorder %s38, 7
      %p206 = por %p204, %p205
      %p208 = scmp.ne.s32.totalorder %s191, %s207
      %p209 = scmp.eq.s32.totalorder %s38, 0
      %p210 = por %p208, %p209
      %s212 = sadd.s32 %s211, 1
      %p215 = scmp.eq.s32.totalorder %s32, 7
      %p216 = scmp.ne.s32.totalorder %s211, %s213
      %p217 = scmp.eq.s32.totalorder %s32, 0
      %p218 = por %p216, %p217
      %p219 = scmp.ne.s32.totalorder %s211, %s213
      %p220 = scmp.eq.s32.totalorder %s37, 7
      %p221 = por %p219, %p220
      %p222 = scmp.ne.s32.totalorder %s213, %s214
      %p223 = scmp.eq.s32.totalorder %s37, 0
      %p224 = por %p222, %p223
      %p225 = scmp.ne.s32.totalorder %s213, %s214
      %p226 = scmp.eq.s32.totalorder %s38, 7
      %p227 = por %p225, %p226
      %p229 = scmp.ne.s32.totalorder %s214, %s228
      %p230 = scmp.eq.s32.totalorder %s38, 0
      %p231 = por %p229, %p230
      %s233 = sadd.s32 %s232, 1
      %p236 = scmp.eq.s32.totalorder %s32, 7
      %p237 = scmp.ne.s32.totalorder %s232, %s234
      %p238 = scmp.eq.s32.totalorder %s32, 0
      %p239 = por %p237, %p238
      %p240 = scmp.ne.s32.totalorder %s232, %s234
      %p241 = scmp.eq.s32.totalorder %s37, 7
      %p242 = por %p240, %p241
      %p243 = scmp.ne.s32.totalorder %s234, %s235
      %p244 = scmp.eq.s32.totalorder %s37, 0
      %p245 = por %p243, %p244
      %p246 = scmp.ne.s32.totalorder %s234, %s235
      %p247 = scmp.eq.s32.totalorder %s38, 7
      %p248 = por %p246, %p247
      %p250 = scmp.ne.s32.totalorder %s235, %s249
      %p251 = scmp.eq.s32.totalorder %s38, 0
      %p252 = por %p250, %p251
      %s254 = sadd.s32 %s253, 1
      %p257 = scmp.eq.s32.totalorder %s32, 7
      %p258 = scmp.ne.s32.totalorder %s253, %s255
      %p259 = scmp.eq.s32.totalorder %s32, 0
      %p260 = por %p258, %p259
      %p261 = scmp.ne.s32.totalorder %s253, %s255
      %p262 = scmp.eq.s32.totalorder %s37, 7
      %p263 = por %p261, %p262
      %p264 = scmp.ne.s32.totalorder %s255, %s256
      %p265 = scmp.eq.s32.totalorder %s37, 0
      %p266 = por %p264, %p265
      %p267 = scmp.ne.s32.totalorder %s255, %s256
      %p268 = scmp.eq.s32.totalorder %s38, 7
      %p269 = por %p267, %p268
      %p271 = scmp.ne.s32.totalorder %s256, %s270
      %p272 = scmp.eq.s32.totalorder %s38, 0
      %p273 = por %p271, %p272
      %s275 = sadd.s32 %s274, 1
      %p278 = scmp.eq.s32.totalorder %s32, 7
      %p279 = scmp.ne.s32.totalorder %s274, %s276
      %p280 = scmp.eq.s32.totalorder %s32, 0
      %p281 = por %p279, %p280
      %p282 = scmp.ne.s32.totalorder %s274, %s276
      %p283 = scmp.eq.s32.totalorder %s37, 7
      %p284 = por %p282, %p283
      %p285 = scmp.ne.s32.totalorder %s276, %s277
      %p286 = scmp.eq.s32.totalorder %s37, 0
      %p287 = por %p285, %p286
      %p288 = scmp.ne.s32.totalorder %s276, %s277
      %p289 = scmp.eq.s32.totalorder %s38, 7
      %p290 = por %p288, %p289
      %p292 = scmp.ne.s32.totalorder %s277, %s291
      %p293 = scmp.eq.s32.totalorder %s38, 0
      %p294 = por %p292, %p293
      %p295 = scmp.le.s32.totalorder 1, %s32
      %p296 = scmp.lt.s32.totalorder %s32, 9
      %p297 = pnand %p295, %p296
      %p298 = pneg %p297
      // Predicated region
      $region9: #{tpu_custom_call.1} parent=5 // pred_check
        _
      $region10: #{tpu_custom_call.1} parent=5 // pred_check_branch
        %300 = sbr.rel (%p297) target = $region12
      $region11: #{tpu_custom_call.1} parent=5 // pred_region
        %s301 = ssub.s32 %s32, 1
        // Predicated region
        $region13: #{tpu_custom_call.1} parent=11 // pred_check
          %p302 = pneg %p107
        $region14: #{tpu_custom_call.1} parent=11 // pred_check_branch
          %304 = sbr.rel (%p302) target = $region16
        $region15: #{tpu_custom_call.1} parent=11 // pred_region
          %s306 = ssub.s32 512, 512
          %307 = vsyncadd [#allocation10], %s306
          %s308 = sshll.u32 [#allocation11], 4
          %s309 = int_to_ptr.vmem [resolvable:$true] %s308
          %314 = dma.hbm_to_vmem [thread:$0]  %s2, 512, %s309, [#allocation10], 128, 128, 8
        $region16: #{tpu_custom_call.1} parent=11 // pred_fallthru
          _
        // Predicated region
        $region17: #{tpu_custom_call.1} parent=11 // pred_check
          %p315 = pneg %p128
        $region18: #{tpu_custom_call.1} parent=11 // pred_check_branch
          %317 = sbr.rel (%p315) target = $region20
        $region19: #{tpu_custom_call.1} parent=11 // pred_region
          %s319 = ssub.s32 512, 512
          %320 = vsyncadd [#allocation13], %s319
          %s321 = sshll.u32 [#allocation12], 4
          %s322 = int_to_ptr.vmem [resolvable:$true] %s321
          %327 = dma.hbm_to_vmem [thread:$0]  %s3, 512, %s322, [#allocation13], 128, 128, 8
        $region20: #{tpu_custom_call.1} parent=11 // pred_fallthru
          _
        // Predicated region
        $region21: #{tpu_custom_call.1} parent=11 // pred_check
          %p328 = pneg %p149
        $region22: #{tpu_custom_call.1} parent=11 // pred_check_branch
          %330 = sbr.rel (%p328) target = $region24
        $region23: #{tpu_custom_call.1} parent=11 // pred_region
          _
        $region24: #{tpu_custom_call.1} parent=11 // pred_fallthru
          _
      $region12: #{tpu_custom_call.1} parent=5 // pred_fallthru
        _
      %p331 = scmp.lt.s32.totalorder %s32, 8
      // Predicated region
      $region25: #{tpu_custom_call.1} parent=5 // pred_check
        %p332 = pneg %p331
      $region26: #{tpu_custom_call.1} parent=5 // pred_check_branch
        %334 = sbr.rel (%p332) target = $region28
      $region27: #{tpu_custom_call.1} parent=5 // pred_region
        // Predicated region
        $region29: #{tpu_custom_call.1} parent=27 // pred_check
          %p335 = pneg %p52
        $region30: #{tpu_custom_call.1} parent=27 // pred_check_branch
          %337 = sbr.rel (%p335) target = $region32
        $region31: #{tpu_custom_call.1} parent=27 // pred_region
          %s338 = sand.u32 %s42, 1
          %s339 = scalar_lea.sflag [#allocation7], %s338
          %s340 = sand.u32 %s42, 1
          %s341 = smul.addr %s340, 2
          %s342 = scalar_lea.vmem [#allocation6], %s341
          %s344 = ssub.s32 32, 32
          %345 = vsyncadd %s339, %s344
          %s346 = smul.addr %s32, 2
          %s347 = smul.addr %s346, 32
          %s348 = scalar_lea.hbm %s0, %s347
          %s350 = sshll.u32 %s342, 4
          %s351 = int_to_ptr.vmem [resolvable:$true] %s350
          %353 = dma.hbm_to_vmem [thread:$0]  %s348, 32, %s351, %s339
        $region32: #{tpu_custom_call.1} parent=27 // pred_fallthru
          _
        // Predicated region
        $region33: #{tpu_custom_call.1} parent=27 // pred_check
          %p354 = pneg %p80
        $region34: #{tpu_custom_call.1} parent=27 // pred_check_branch
          %356 = sbr.rel (%p354) target = $region36
        $region35: #{tpu_custom_call.1} parent=27 // pred_region
          %s357 = sand.u32 %s32, 1
          %s358 = scalar_lea.sflag [#allocation10], %s357
          %s359 = sand.u32 %s70, 1
          %s360 = smul.addr %s359, 2
          %s361 = scalar_lea.vmem [#allocation9], %s360
          %s362 = ssub.s32 7, %s32
          %s364 = ssub.s32 32, 32
          %365 = vsyncadd %s358, %s364
          %s366 = smul.addr %s362, 2
          %s367 = sadd.s32 1, %s366
          %s368 = smul.addr %s367, 32
          %s369 = scalar_lea.hbm %s1, %s368
          %s371 = sshll.u32 %s361, 4
          %s372 = int_to_ptr.vmem [resolvable:$true] %s371
          %374 = dma.hbm_to_vmem [thread:$0]  %s369, 32, %s372, %s358
        $region36: #{tpu_custom_call.1} parent=27 // pred_fallthru
          _
      $region28: #{tpu_custom_call.1} parent=5 // pred_fallthru
        _
      %p375 = scmp.le.s32.totalorder 1, %s32
      %p376 = scmp.lt.s32.totalorder %s32, 9
      %p377 = pnand %p375, %p376
      %p378 = pneg %p377
      // Predicated region
      $region37: #{tpu_custom_call.1} parent=5 // pred_check
        _
      $region38: #{tpu_custom_call.1} parent=5 // pred_check_branch
        %380 = sbr.rel (%p377) target = $region40
      $region39: #{tpu_custom_call.1} parent=5 // pred_region
        %s381 = ssub.s32 %s32, 1
        %s382 = sand.u32 %s45, 1
        %s383 = scalar_lea.sflag [#allocation7], %s382
        %s384 = sand.u32 %s45, 1
        %s385 = smul.addr %s384, 2
        %s386 = scalar_lea.vmem [#allocation6], %s385
        // Predicated region
        $region41: #{tpu_custom_call.1} parent=39 // pred_check
          %p387 = pneg %p58
        $region42: #{tpu_custom_call.1} parent=39 // pred_check_branch
          %389 = sbr.rel (%p387) target = $region44
        $region43: #{tpu_custom_call.1} parent=39 // pred_region
          %390 = dma.done %s383, 32
        $region44: #{tpu_custom_call.1} parent=39 // pred_fallthru
          _
        %s391 = sand.u32 %s37, 1
        %s392 = scalar_lea.sflag [#allocation10], %s391
        %s393 = sand.u32 %s73, 1
        %s394 = smul.addr %s393, 2
        %s395 = scalar_lea.vmem [#allocation9], %s394
        // Predicated region
        $region45: #{tpu_custom_call.1} parent=39 // pred_check
          %p396 = pneg %p86
        $region46: #{tpu_custom_call.1} parent=39 // pred_check_branch
          %398 = sbr.rel (%p396) target = $region48
        $region47: #{tpu_custom_call.1} parent=39 // pred_region
          %399 = dma.done %s392, 32
        $region48: #{tpu_custom_call.1} parent=39 // pred_fallthru
          _
        // Predicated region
        $region49: #{tpu_custom_call.1} parent=39 // pred_check
          %p400 = pneg %p107
        $region50: #{tpu_custom_call.1} parent=39 // pred_check_branch
          %402 = sbr.rel (%p400) target = $region52
        $region51: #{tpu_custom_call.1} parent=39 // pred_region
          %403 = dma.done [#allocation10], 512
        $region52: #{tpu_custom_call.1} parent=39 // pred_fallthru
          _
        // Predicated region
        $region53: #{tpu_custom_call.1} parent=39 // pred_check
          %p404 = pneg %p128
        $region54: #{tpu_custom_call.1} parent=39 // pred_check_branch
          %406 = sbr.rel (%p404) target = $region56
        $region55: #{tpu_custom_call.1} parent=39 // pred_region
          %407 = dma.done [#allocation13], 512
        $region56: #{tpu_custom_call.1} parent=39 // pred_fallthru
          _
        %s408 = sand.u32 %s45, 1
        %s409 = scalar_lea.sflag [#allocation7], %s408
        %s410 = sand.u32 %s45, 1
        %s411 = smul.addr %s410, 2
        %s412 = scalar_lea.vmem [#allocation6], %s411
        %p413 = pneg %p58
        %p414 = pneg %p55
        %s415 = sand.u32 %s37, 1
        %s416 = scalar_lea.sflag [#allocation10], %s415
        %s417 = sand.u32 %s73, 1
        %s418 = smul.addr %s417, 2
        %s419 = scalar_lea.vmem [#allocation9], %s418
        %p420 = pneg %p86
        %p421 = pneg %p83
        %p422 = pneg %p107
        %p423 = pneg %p104
        %p424 = pneg %p128
        %p425 = pneg %p125
        %p426 = pneg %p149
        %p427 = pneg %p146
        %p428 = pneg %p175
        %p429 = pneg %p172
        %s430 = sand.u32 %s162, 1
        %s431 = scalar_lea.sflag [#allocation8], %s430
        %s432 = sand.u32 %s162, 1
        %s433 = smul.addr %s432, 2
        %s434 = scalar_lea.vmem [#allocation14], %s433
        %p435 = pneg %p203
        %p436 = pneg %p200
        %s437 = sand.u32 %s37, 1
        %s438 = scalar_lea.sflag [#allocation16], %s437
        %s439 = sand.u32 %s190, 1
        %s440 = smul.addr %s439, 2
        %s441 = scalar_lea.vmem [#allocation15], %s440
        %p442 = pneg %p224
        %p443 = pneg %p221
        %p444 = pneg %p245
        %p445 = pneg %p242
        %p446 = pneg %p266
        %p447 = pneg %p263
        %p448 = pneg %p287
        %p449 = pneg %p284
        %s450 = ssub.s32 7, %s37
        %s451 = ssub.s32 7, %s37
        %p452 = scmp.eq.s32.totalorder %s37, 0
        // Predicated region
        $region57: #{tpu_custom_call.1} parent=39 // pred_check
          %p453 = pneg %p452
        $region58: #{tpu_custom_call.1} parent=39 // pred_check_branch
          %455 = sbr.rel (%p453) target = $region60
        $region59: #{tpu_custom_call.1} parent=39 // pred_region
          %vm456 = vcmask 254976
          %457 = vst.msk [vmem:[#allocation2] sm:$0x3] %vm456, 0.0
          %458 = vst.msk [vmem:[#allocation3] sm:$0x3] %vm456, 0.0
          %459 = vst.msk [vmem:[#allocation4] sm:$0x3] %vm456, 0.0
          %460 = vst.msk [vmem:[#allocation5] sm:$0x3] %vm456, 0.0
        $region60: #{tpu_custom_call.1} parent=39 // pred_fallthru
          _
        %v461 = vld [vmem:[%s4] sm:$0x3]
        %v462 = vstv %s37
        %vm463 = vcmp.lt.s32.totalorder %v462, %v461
        %s464 = ssub.s32 7, %s37
        %v465 = vstv %s464
        %vm466 = vcmp.lt.s32.totalorder %v465, %v461
        %v467 = vld [vmem:[%s386] sm:$0x3]
        %v468 = vld [vmem:[#allocation2] sm:$0x3]
        %v469 = vld [vmem:[#allocation11] sm:$0xff]
        %v470 = vld [vmem:[#allocation11 + $0x8] sm:$0xff]
        %v471 = vld [vmem:[#allocation11 + $0x10] sm:$0xff]
        %v472 = vld [vmem:[#allocation11 + $0x18] sm:$0xff]
        %vm473 = vcmask 261120
        %v475 = vsel %vm473, %v468, 0
        %477 = vmatprep.subr.mxu0 0.0
        %478 = vmatpush1.msra.mxu0 0.0
        %479 = vmatprep.subr.mxu0 0.0
        %480 = vmatpush1.msra.mxu0 0.0
        %481 = vmatprep.subr.mxu0 0.0
        %482 = vmatpush1.msra.mxu0 0.0
        %483 = vmatprep.subr.mxu0 0.0
        %484 = vmatpush1.msra.mxu0 0.0
        %485 = vmatprep.subr.mxu0 0.0
        %486 = vmatpush1.msra.mxu0 0.0
        %487 = vmatprep.subr.mxu0 0.0
        %488 = vmatpush1.msra.mxu0 0.0
        %489 = vmatprep.subr.mxu0 0.0
        %490 = vmatpush1.msra.mxu0 0.0
        %491 = vmatprep.subr.mxu0 0.0
        %492 = vmatpush1.msra.mxu0 0.0
        %493 = vmatprep.subr.mxu0 0.0
        %494 = vmatpush1.msra.mxu0 0.0
        %495 = vmatprep.subr.mxu0 0.0
        %496 = vmatpush1.msra.mxu0 0.0
        %497 = vmatprep.subr.mxu0 0.0
        %498 = vmatpush1.msra.mxu0 0.0
        %499 = vmatprep.subr.mxu0 0.0
        %500 = vmatpush1.msra.mxu0 0.0
        %501 = vmatprep.subr.mxu0 0.0
        %502 = vmatpush1.msra.mxu0 %v472
        %503 = vmatprep.subr.mxu0 0.0
        %504 = vmatpush1.msra.mxu0 %v471
        %505 = vmatprep.subr.mxu0 0.0
        %506 = vmatpush1.msra.mxu0 %v470
        %507 = vmatprep.subr.mxu0 0.0
        %508 = vmatpush1.msra.mxu0 %v469
        %509 = vmatprep.subr.mxu0 0.0
        %510 = vmatpush2.msra.mxu0 0.0
        %511 = vmatprep.subr.mxu0 0.0
        %512 = vmatpush2.msra.mxu0 0.0
        %513 = vmatprep.subr.mxu0 0.0
        %514 = vmatpush2.msra.mxu0 0.0
        %515 = vmatprep.subr.mxu0 0.0
        %516 = vmatpush2.msra.mxu0 0.0
        %517 = vmatprep.subr.mxu0 0.0
        %518 = vmatpush2.msra.mxu0 0.0
        %519 = vmatprep.subr.mxu0 0.0
        %520 = vmatpush2.msra.mxu0 0.0
        %521 = vmatprep.subr.mxu0 0.0
        %522 = vmatpush2.msra.mxu0 0.0
        %523 = vmatprep.subr.mxu0 0.0
        %524 = vmatpush2.msra.mxu0 0.0
        %525 = vmatprep.subr.mxu0 0.0
        %526 = vmatpush2.msra.mxu0 0.0
        %527 = vmatprep.subr.mxu0 0.0
        %528 = vmatpush2.msra.mxu0 0.0
        %529 = vmatprep.subr.mxu0 0.0
        %530 = vmatpush2.msra.mxu0 0.0
        %531 = vmatprep.subr.mxu0 0.0
        %532 = vmatpush2.msra.mxu0 0.0
        %533 = vmatprep.subr.mxu0 0.0
        %534 = vmatpush2.msra.mxu0 0.0
        %535 = vmatprep.subr.mxu0 0.0
        %536 = vmatpush2.msra.mxu0 0.0
        %537 = vmatprep.subr.mxu0 0.0
        %538 = vmatpush2.msra.mxu0 0.0
        %539 = vmatprep.subr.mxu0 0.0
        %540 = vmatpush2.msra.mxu0 0.0
        %541 = vmatprep.mubr.f32.mxu0 0.0
        %542 = vmatmul.mubr.f32.gmra.mxu0 %v475
        %v543 = vpop.f32.mrf.mxu0
        %v544 = vadd.f32 0.0, %v543
        %v545 = vpop.f32.mrf.mxu0
        %546 = vdwg.mxu0
        %v547 = vadd.f32 %v467, %v544
        %v548 = vld [vmem:[%s395] sm:$0x3]
        %v549 = vld [vmem:[#allocation4] sm:$0x3]
        %v550 = vld [vmem:[#allocation12] sm:$0xff]
        %v551 = vld [vmem:[#allocation12 + $0x8] sm:$0xff]
        %v552 = vld [vmem:[#allocation12 + $0x10] sm:$0xff]
        %v553 = vld [vmem:[#allocation12 + $0x18] sm:$0xff]
        %v555 = vsel %vm473, %v549, 0
        %557 = vmatprep.subr.mxu0 0.0
        %558 = vmatpush1.msra.mxu0 0.0
        %559 = vmatprep.subr.mxu0 0.0
        %560 = vmatpush1.msra.mxu0 0.0
        %561 = vmatprep.subr.mxu0 0.0
        %562 = vmatpush1.msra.mxu0 0.0
        %563 = vmatprep.subr.mxu0 0.0
        %564 = vmatpush1.msra.mxu0 0.0
        %565 = vmatprep.subr.mxu0 0.0
        %566 = vmatpush1.msra.mxu0 0.0
        %567 = vmatprep.subr.mxu0 0.0
        %568 = vmatpush1.msra.mxu0 0.0
        %569 = vmatprep.subr.mxu0 0.0
        %570 = vmatpush1.msra.mxu0 0.0
        %571 = vmatprep.subr.mxu0 0.0
        %572 = vmatpush1.msra.mxu0 0.0
        %573 = vmatprep.subr.mxu0 0.0
        %574 = vmatpush1.msra.mxu0 0.0
        %575 = vmatprep.subr.mxu0 0.0
        %576 = vmatpush1.msra.mxu0 0.0
        %577 = vmatprep.subr.mxu0 0.0
        %578 = vmatpush1.msra.mxu0 0.0
        %579 = vmatprep.subr.mxu0 0.0
        %580 = vmatpush1.msra.mxu0 0.0
        %581 = vmatprep.subr.mxu0 0.0
        %582 = vmatpush1.msra.mxu0 %v553
        %583 = vmatprep.subr.mxu0 0.0
        %584 = vmatpush1.msra.mxu0 %v552
        %585 = vmatprep.subr.mxu0 0.0
        %586 = vmatpush1.msra.mxu0 %v551
        %587 = vmatprep.subr.mxu0 0.0
        %588 = vmatpush1.msra.mxu0 %v550
        %589 = vmatprep.subr.mxu0 0.0
        %590 = vmatpush2.msra.mxu0 0.0
        %591 = vmatprep.subr.mxu0 0.0
        %592 = vmatpush2.msra.mxu0 0.0
        %593 = vmatprep.subr.mxu0 0.0
        %594 = vmatpush2.msra.mxu0 0.0
        %595 = vmatprep.subr.mxu0 0.0
        %596 = vmatpush2.msra.mxu0 0.0
        %597 = vmatprep.subr.mxu0 0.0
        %598 = vmatpush2.msra.mxu0 0.0
        %599 = vmatprep.subr.mxu0 0.0
        %600 = vmatpush2.msra.mxu0 0.0
        %601 = vmatprep.subr.mxu0 0.0
        %602 = vmatpush2.msra.mxu0 0.0
        %603 = vmatprep.subr.mxu0 0.0
        %604 = vmatpush2.msra.mxu0 0.0
        %605 = vmatprep.subr.mxu0 0.0
        %606 = vmatpush2.msra.mxu0 0.0
        %607 = vmatprep.subr.mxu0 0.0
        %608 = vmatpush2.msra.mxu0 0.0
        %609 = vmatprep.subr.mxu0 0.0
        %610 = vmatpush2.msra.mxu0 0.0
        %611 = vmatprep.subr.mxu0 0.0
        %612 = vmatpush2.msra.mxu0 0.0
        %613 = vmatprep.subr.mxu0 0.0
        %614 = vmatpush2.msra.mxu0 0.0
        %615 = vmatprep.subr.mxu0 0.0
        %616 = vmatpush2.msra.mxu0 0.0
        %617 = vmatprep.subr.mxu0 0.0
        %618 = vmatpush2.msra.mxu0 0.0
        %619 = vmatprep.subr.mxu0 0.0
        %620 = vmatpush2.msra.mxu0 0.0
        %621 = vmatprep.mubr.f32.mxu0 0.0
        %622 = vmatmul.mubr.f32.gmra.mxu0 %v555
        %v623 = vpop.f32.mrf.mxu0
        %v624 = vadd.f32 0.0, %v623
        %v625 = vpop.f32.mrf.mxu0
        %626 = vdwg.mxu0
        %v627 = vadd.f32 %v548, %v624
        %v628 = vld [vmem:[#allocation3] sm:$0x3]
        %v629 = vxor.u32 %v547, 2147483648
        %v630 = vmul.f32 %v629, 1.442695
        %v631 = vpow.pop %v630
        %v632 = vadd.f32 %v631, 1.0
        %v633 = vrcp.pop %v632
        %v634 = vmul.f32 1.0, %v633
        %v635 = vtanh.pop %v547
        %637 = vrot.lane.b32.xlu0 %v628, 32
        %v638 = vpop.permute.xlu0 %637
        %v640 = vmul.f32 %v634, %v638
        %642 = vrot.lane.b32.xlu0 %v635, 64
        %v643 = vpop.permute.xlu0 %642
        %v645 = vmul.f32 %v634, %v643
        %647 = vrot.lane.b32.xlu0 %v645, 32
        %v648 = vpop.permute.xlu0 %647
        %v650 = vadd.f32 %v640, %v648
        %v651 = vtanh.pop %v650
        %653 = vrot.lane.b32.xlu0 %v651, 64
        %v654 = vpop.permute.xlu0 %653
        %v656 = vmul.f32 %v634, %v654
        %v657 = vld [vmem:[#allocation5] sm:$0x3]
        %v658 = vxor.u32 %v627, 2147483648
        %v659 = vmul.f32 %v658, 1.442695
        %v660 = vpow.pop %v659
        %v661 = vadd.f32 %v660, 1.0
        %v662 = vrcp.pop %v661
        %v663 = vmul.f32 1.0, %v662
        %v664 = vtanh.pop %v627
        %666 = vrot.lane.b32.xlu0 %v657, 32
        %v667 = vpop.permute.xlu0 %666
        %v669 = vmul.f32 %v663, %v667
        %671 = vrot.lane.b32.xlu0 %v664, 64
        %v672 = vpop.permute.xlu0 %671
        %v674 = vmul.f32 %v663, %v672
        %676 = vrot.lane.b32.xlu0 %v674, 32
        %v677 = vpop.permute.xlu0 %676
        %v679 = vadd.f32 %v669, %v677
        %v680 = vtanh.pop %v679
        %682 = vrot.lane.b32.xlu0 %v680, 64
        %v683 = vpop.permute.xlu0 %682
        %v685 = vmul.f32 %v663, %v683
        %687 = vrot.lane.b32.xlu0 %v656, 32
        %v688 = vpop.permute.xlu0 %687
        %v690 = vsel %vm463, %v688, %v468
        %vm691 = vcmask 254976
        %692 = vst.msk [vmem:[#allocation2] sm:$0x3] %vm691, %v690
        %v693 = vld [vmem:[#allocation3] sm:$0x3]
        %695 = vrot.lane.b32.xlu0 %v650, 96
        %v696 = vpop.permute.xlu0 %695
        %v698 = vsel %vm463, %v696, %v693
        %699 = vst.msk [vmem:[#allocation3] sm:$0x3] %vm691, %v698
        %v700 = vld [vmem:[#allocation4] sm:$0x3]
        %702 = vrot.lane.b32.xlu0 %v685, 32
        %v703 = vpop.permute.xlu0 %702
        %v705 = vsel %vm466, %v703, %v700
        %706 = vst.msk [vmem:[#allocation4] sm:$0x3] %vm691, %v705
        %v707 = vld [vmem:[#allocation5] sm:$0x3]
        %709 = vrot.lane.b32.xlu0 %v679, 96
        %v710 = vpop.permute.xlu0 %709
        %v712 = vsel %vm466, %v710, %v707
        %713 = vst.msk [vmem:[#allocation5] sm:$0x3] %vm691, %v712
        %v714 = vsel %vm463, %v688, 0.0
        %715 = vst.msk [vmem:[%s434] sm:$0x3] %vm691, %v714
        %v716 = vsel %vm466, %v703, 0.0
        %717 = vst.msk [vmem:[%s441] sm:$0x3] %vm691, %v716
        %p718 = scmp.eq.s32.totalorder %s37, 7
        // Predicated region
        $region61: #{tpu_custom_call.1} parent=39 // pred_check
          %p719 = pneg %p718
        $region62: #{tpu_custom_call.1} parent=39 // pred_check_branch
          %721 = sbr.rel (%p719) target = $region64
        $region63: #{tpu_custom_call.1} parent=39 // pred_region
          %v722 = vld [vmem:[#allocation2] sm:$0x3]
          %723 = vst.msk [vmem:[#allocation17] sm:$0x3] %vm691, %v722
          %v724 = vld [vmem:[#allocation3] sm:$0x3]
          %725 = vst.msk [vmem:[#allocation18] sm:$0x3] %vm691, %v724
          %v726 = vld [vmem:[#allocation4] sm:$0x3]
          %727 = vst.msk [vmem:[#allocation20] sm:$0x3] %vm691, %v726
          %v728 = vld [vmem:[#allocation5] sm:$0x3]
          %729 = vst.msk [vmem:[#allocation21] sm:$0x3] %vm691, %v728
        $region64: #{tpu_custom_call.1} parent=39 // pred_fallthru
          _
        %s730 = sand.u32 %s162, 1
        %s731 = scalar_lea.sflag [#allocation8], %s730
        %s732 = sand.u32 %s162, 1
        %s733 = smul.addr %s732, 2
        %s734 = scalar_lea.vmem [#allocation14], %s733
        %s735 = sand.u32 %s37, 1
        %s736 = scalar_lea.sflag [#allocation16], %s735
        %s737 = sand.u32 %s190, 1
        %s738 = smul.addr %s737, 2
        %s739 = scalar_lea.vmem [#allocation15], %s738
        // Predicated region
        $region65: #{tpu_custom_call.1} parent=39 // pred_check
          %p740 = pneg %p172
        $region66: #{tpu_custom_call.1} parent=39 // pred_check_branch
          %742 = sbr.rel (%p740) target = $region68
        $region67: #{tpu_custom_call.1} parent=39 // pred_region
          %s744 = ssub.s32 32, 32
          %745 = vsyncadd %s731, %s744
          %s746 = smul.addr %s37, 32
          %s747 = scalar_lea.hbm %s5, %s746
          %s749 = sshll.u32 %s734, 4
          %s750 = int_to_ptr.vmem [resolvable:$true] %s749
          %752 = dma.vmem_to_hbm [thread:$0]  %s750, 32, %s747, %s731
        $region68: #{tpu_custom_call.1} parent=39 // pred_fallthru
          _
        // Predicated region
        $region69: #{tpu_custom_call.1} parent=39 // pred_check
          %p753 = pneg %p200
        $region70: #{tpu_custom_call.1} parent=39 // pred_check_branch
          %755 = sbr.rel (%p753) target = $region72
        $region71: #{tpu_custom_call.1} parent=39 // pred_region
          %s756 = ssub.s32 7, %s37
          %s758 = ssub.s32 32, 32
          %759 = vsyncadd %s736, %s758
          %s760 = smul.addr %s756, 32
          %s761 = scalar_lea.hbm %s6, %s760
          %s763 = sshll.u32 %s739, 4
          %s764 = int_to_ptr.vmem [resolvable:$true] %s763
          %766 = dma.vmem_to_hbm [thread:$0]  %s764, 32, %s761, %s736
        $region72: #{tpu_custom_call.1} parent=39 // pred_fallthru
          _
        // Predicated region
        $region73: #{tpu_custom_call.1} parent=39 // pred_check
          %p767 = pneg %p221
        $region74: #{tpu_custom_call.1} parent=39 // pred_check_branch
          %769 = sbr.rel (%p767) target = $region76
        $region75: #{tpu_custom_call.1} parent=39 // pred_region
          %s771 = ssub.s32 32, 32
          %772 = vsyncadd [#allocation16], %s771
          %s774 = sshll.u32 [#allocation17], 4
          %s775 = int_to_ptr.vmem [resolvable:$true] %s774
          %777 = dma.vmem_to_hbm [thread:$0]  %s775, 32, %s7, [#allocation16]
        $region76: #{tpu_custom_call.1} parent=39 // pred_fallthru
          _
        // Predicated region
        $region77: #{tpu_custom_call.1} parent=39 // pred_check
          %p778 = pneg %p242
        $region78: #{tpu_custom_call.1} parent=39 // pred_check_branch
          %780 = sbr.rel (%p778) target = $region80
        $region79: #{tpu_custom_call.1} parent=39 // pred_region
          %s782 = ssub.s32 32, 32
          %783 = vsyncadd [#allocation19], %s782
          %s785 = sshll.u32 [#allocation18], 4
          %s786 = int_to_ptr.vmem [resolvable:$true] %s785
          %788 = dma.vmem_to_hbm [thread:$0]  %s786, 32, %s8, [#allocation19]
        $region80: #{tpu_custom_call.1} parent=39 // pred_fallthru
          _
        // Predicated region
        $region81: #{tpu_custom_call.1} parent=39 // pred_check
          %p789 = pneg %p263
        $region82: #{tpu_custom_call.1} parent=39 // pred_check_branch
          %791 = sbr.rel (%p789) target = $region84
        $region83: #{tpu_custom_call.1} parent=39 // pred_region
          %s793 = ssub.s32 32, 32
          %794 = vsyncadd [#allocation19], %s793
          %s796 = sshll.u32 [#allocation20], 4
          %s797 = int_to_ptr.vmem [resolvable:$true] %s796
          %799 = dma.vmem_to_hbm [thread:$0]  %s797, 32, %s9, [#allocation19]
        $region84: #{tpu_custom_call.1} parent=39 // pred_fallthru
          _
        // Predicated region
        $region85: #{tpu_custom_call.1} parent=39 // pred_check
          %p800 = pneg %p284
        $region86: #{tpu_custom_call.1} parent=39 // pred_check_branch
          %802 = sbr.rel (%p800) target = $region88
        $region87: #{tpu_custom_call.1} parent=39 // pred_region
          %s804 = ssub.s32 32, 32
          %805 = vsyncadd [#allocation22], %s804
          %s807 = sshll.u32 [#allocation21], 4
          %s808 = int_to_ptr.vmem [resolvable:$true] %s807
          %810 = dma.vmem_to_hbm [thread:$0]  %s808, 32, %s10, [#allocation22]
        $region88: #{tpu_custom_call.1} parent=39 // pred_fallthru
          _
        // Predicated region
        $region89: #{tpu_custom_call.1} parent=39 // pred_check
          %p811 = pneg %p221
        $region90: #{tpu_custom_call.1} parent=39 // pred_check_branch
          %813 = sbr.rel (%p811) target = $region92
        $region91: #{tpu_custom_call.1} parent=39 // pred_region
          %814 = dma.done [#allocation16], 32
        $region92: #{tpu_custom_call.1} parent=39 // pred_fallthru
          _
        // Predicated region
        $region93: #{tpu_custom_call.1} parent=39 // pred_check
          %p815 = pneg %p242
        $region94: #{tpu_custom_call.1} parent=39 // pred_check_branch
          %817 = sbr.rel (%p815) target = $region96
        $region95: #{tpu_custom_call.1} parent=39 // pred_region
          %818 = dma.done [#allocation19], 32
        $region96: #{tpu_custom_call.1} parent=39 // pred_fallthru
          _
        // Predicated region
        $region97: #{tpu_custom_call.1} parent=39 // pred_check
          %p819 = pneg %p263
        $region98: #{tpu_custom_call.1} parent=39 // pred_check_branch
          %821 = sbr.rel (%p819) target = $region100
        $region99: #{tpu_custom_call.1} parent=39 // pred_region
          %822 = dma.done [#allocation19], 32
        $region100: #{tpu_custom_call.1} parent=39 // pred_fallthru
          _
        // Predicated region
        $region101: #{tpu_custom_call.1} parent=39 // pred_check
          %p823 = pneg %p284
        $region102: #{tpu_custom_call.1} parent=39 // pred_check_branch
          %825 = sbr.rel (%p823) target = $region104
        $region103: #{tpu_custom_call.1} parent=39 // pred_region
          %826 = dma.done [#allocation22], 32
        $region104: #{tpu_custom_call.1} parent=39 // pred_fallthru
          _
      $region40: #{tpu_custom_call.1} parent=5 // pred_fallthru
        _
      %p827 = scmp.le.s32.totalorder 2, %s32
      // Predicated region
      $region105: #{tpu_custom_call.1} parent=5 // pred_check
        %p828 = pneg %p827
      $region106: #{tpu_custom_call.1} parent=5 // pred_check_branch
        %830 = sbr.rel (%p828) target = $region108
      $region107: #{tpu_custom_call.1} parent=5 // pred_region
        %s831 = ssub.s32 %s32, 2
        // Predicated region
        $region109: #{tpu_custom_call.1} parent=107 // pred_check
          %p832 = pneg %p178
        $region110: #{tpu_custom_call.1} parent=107 // pred_check_branch
          %834 = sbr.rel (%p832) target = $region112
        $region111: #{tpu_custom_call.1} parent=107 // pred_region
          %s835 = sand.u32 %s163, 1
          %s836 = scalar_lea.sflag [#allocation8], %s835
          %s837 = sand.u32 %s163, 1
          %s838 = smul.addr %s837, 2
          %s839 = scalar_lea.vmem [#allocation14], %s838
          %840 = dma.done %s836, 32
        $region112: #{tpu_custom_call.1} parent=107 // pred_fallthru
          _
        // Predicated region
        $region113: #{tpu_custom_call.1} parent=107 // pred_check
          %p841 = pneg %p206
        $region114: #{tpu_custom_call.1} parent=107 // pred_check_branch
          %843 = sbr.rel (%p841) target = $region116
        $region115: #{tpu_custom_call.1} parent=107 // pred_region
          %s844 = sand.u32 %s38, 1
          %s845 = scalar_lea.sflag [#allocation16], %s844
          %s846 = sand.u32 %s191, 1
          %s847 = smul.addr %s846, 2
          %s848 = scalar_lea.vmem [#allocation15], %s847
          %849 = dma.done %s845, 32
        $region116: #{tpu_custom_call.1} parent=107 // pred_fallthru
          _
      $region108: #{tpu_custom_call.1} parent=5 // pred_fallthru
        _
    $region6: #{tpu_custom_call.1} parent=1 // loop_footer
      %s36 = sadd.s32 1, %s32
    $region7: #{tpu_custom_call.1} parent=1 // loop_footer_branch
      %31 = sbr.rel target = $region3
    $region8: #{tpu_custom_call.1} parent=1 // loop_exit
      _
    %850 = vsyncpa [#allocation7], 1
    %s851 = scalar_lea.sflag [#allocation7], 1
    %852 = vsyncpa %s851, 1
    %853 = vsyncpa [#allocation10], 1
    %s854 = scalar_lea.sflag [#allocation10], 1
    %855 = vsyncpa %s854, 1
    %856 = vsyncpa [#allocation13], 1
    %857 = vsyncpa [#allocation8], 1
    %s858 = scalar_lea.sflag [#allocation8], 1
    %859 = vsyncpa %s858, 1
    %860 = vsyncpa [#allocation16], 1
    %s861 = scalar_lea.sflag [#allocation16], 1
    %862 = vsyncpa %s861, 1
    %863 = vsyncpa [#allocation19], 1
    %864 = vsyncpa [#allocation22], 1

</llo_original>
